<compile_context>
chip_gen: v5e
topology: v5e:2x2
jax: 0.10.0
libtpu: 0.0.40
codegen_flags: <defaults>
</compile_context>

<pallas_src>
import functools

import jax
import jax.numpy as jnp
import numpy as np
from jax.experimental import pallas as pl
from jax.experimental.pallas import tpu as pltpu

# ---- static problem sizes (Connect-Four board: 6 x 7, 3 input planes) ----
C_IN, H, W_SP = 3, 6, 7
HW = H * W_SP                   # 42
C_OUT = 128
KH = KW = 3
K_RAW = C_IN * KH * KW          # 27
K_PAD = 32                      # pad contraction dim (zeros) only up to 32
BN_EPS = 1e-5


def _conv_bn_relu_kernel(count_ref, p_ref, w_ref, g_ref, be_ref, o_ref,
                         sum_ref, sq_ref, sc_ref, sh_ref, *, tb):
    """Two-phase fused conv + batch-stat BatchNorm + ReLU.

    count_ref: (1,) i32 SMEM   true per-channel element count (B * 42)
    p_ref    : (TB, 32, 42) f32  per-sample transposed patch matrices
    w_ref    : (128, 32) f32     conv weight, channel-major
    g_ref/be_ref: (128, 1) f32   BatchNorm gamma / beta
    o_ref    : (TB, 128, 42) f32 channel-major output tile
    scratch  : four (128, 1) f32 accumulators (sum, sumsq, scale, shift)
    """
    ph = pl.program_id(0)                 # 0 = stats pass, 1 = apply pass
    it = pl.program_id(1)                 # batch-tile index
    last = pl.num_programs(1) - 1

    @pl.when((ph == 0) & (it == 0))
    def _init():
        sum_ref[...] = jnp.zeros_like(sum_ref)
        sq_ref[...] = jnp.zeros_like(sq_ref)

    w = w_ref[...]                        # (C_OUT, K_PAD)

    @pl.when(ph == 0)
    def _stats():
        s = jnp.zeros((C_OUT, 1), jnp.float32)
        ss = jnp.zeros((C_OUT, 1), jnp.float32)
        for b in range(tb):               # static unrolled loop over the tile
            c = jnp.dot(w, p_ref[b], preferred_element_type=jnp.float32)  # (128, 42)
            s = s + jnp.sum(c, axis=1, keepdims=True)
            ss = ss + jnp.sum(c * c, axis=1, keepdims=True)
        sum_ref[...] += s
        sq_ref[...] += ss

    @pl.when((ph == 0) & (it == last))
    def _finalize():
        cnt = count_ref[0].astype(jnp.float32)
        mean = sum_ref[...] / cnt
        var = sq_ref[...] / cnt - mean * mean
        inv_std = jax.lax.rsqrt(var + BN_EPS)
        scale = g_ref[...] * inv_std
        sc_ref[...] = scale
        sh_ref[...] = be_ref[...] - scale * mean

    @pl.when(ph == 1)
    def _apply():
        scale = sc_ref[...]
        shift = sh_ref[...]
        for b in range(tb):
            c = jnp.dot(w, p_ref[b], preferred_element_type=jnp.float32)  # (128, 42)
            o_ref[b] = jnp.maximum(c * scale + shift, 0.0)


def convolutional_block(x, conv_w, conv_b, gamma, beta):
    """Forward pass of ConvolutionalBlock.

    x      : (..., 3, 6, 7)  -> reshaped to (-1, 3, 6, 7), NCHW
    conv_w : (128, 3, 3, 3)  (PyTorch OIHW)
    conv_b : (128,)          (unused: the conv bias cancels inside BatchNorm)
    gamma, beta : (128,)     BatchNorm affine params
    returns: (B, 128, 6, 7) f32
    """
    del conv_b  # mathematically cancels through batch-norm normalization
    x = jnp.reshape(x, (-1, C_IN, H, W_SP)).astype(jnp.float32)
    B = x.shape[0]

    TB = B if B <= 16 else 16
    B_pad = ((B + TB - 1) // TB) * TB
    nbt = B_pad // TB
    if B_pad != B:
        x = jnp.pad(x, ((0, B_pad - B), (0, 0), (0, 0), (0, 0)))

    # ---- host glue: im2col -> per-sample transposed patches (B_pad, 32, 42) ----
    x_sp = jnp.pad(x, ((0, 0), (0, 0), (1, 1), (1, 1)))           # (B_pad, 3, 8, 9)
    taps = [x_sp[:, :, kh:kh + H, kw:kw + W_SP]                   # (B_pad, 3, 6, 7)
            for kh in range(KH) for kw in range(KW)]
    patches = jnp.stack(taps, axis=2)                             # (B_pad, 3, 9, 6, 7)
    patches = patches.reshape(B_pad, K_RAW, HW)                   # rows (c,kh,kw), cols h*7+w
    patches = jnp.pad(patches, ((0, 0), (0, K_PAD - K_RAW), (0, 0)))

    # ---- weight (OIHW) -> (C_OUT, K_PAD) channel-major matmul matrix ----
    w_t = conv_w.reshape(C_OUT, K_RAW).astype(jnp.float32)
    w_t = jnp.pad(w_t, ((0, 0), (0, K_PAD - K_RAW)))              # (128, 32)

    g_col = gamma.reshape(C_OUT, 1).astype(jnp.float32)
    b_col = beta.reshape(C_OUT, 1).astype(jnp.float32)
    count = jnp.array([B * HW], dtype=jnp.int32)                  # true stats count

    grid_spec = pltpu.PrefetchScalarGridSpec(
        num_scalar_prefetch=1,
        grid=(2, nbt),                                            # (phase, batch tile)
        in_specs=[
            pl.BlockSpec((TB, K_PAD, HW), lambda ph, i, cnt: (i, 0, 0)),
            pl.BlockSpec((C_OUT, K_PAD), lambda ph, i, cnt: (0, 0)),
            pl.BlockSpec((C_OUT, 1), lambda ph, i, cnt: (0, 0)),
            pl.BlockSpec((C_OUT, 1), lambda ph, i, cnt: (0, 0)),
        ],
        # phase 0: block index pinned to 0 (no writeback); phase 1: block i.
        out_specs=pl.BlockSpec((TB, C_OUT, HW), lambda ph, i, cnt: (ph * i, 0, 0)),
        scratch_shapes=[
            pltpu.VMEM((C_OUT, 1), jnp.float32),   # per-channel sum
            pltpu.VMEM((C_OUT, 1), jnp.float32),   # per-channel sum of squares
            pltpu.VMEM((C_OUT, 1), jnp.float32),   # folded scale
            pltpu.VMEM((C_OUT, 1), jnp.float32),   # folded shift
        ],
    )

    out = pl.pallas_call(
        functools.partial(_conv_bn_relu_kernel, tb=TB),
        out_shape=jax.ShapeDtypeStruct((B_pad, C_OUT, HW), jnp.float32),
        grid_spec=grid_spec,
        compiler_params=pltpu.CompilerParams(
            dimension_semantics=("arbitrary", "arbitrary")),
    )(count, patches, w_t, g_col, b_col)

    if B_pad != B:
        out = out[:B]
    return out.reshape(B, C_OUT, H, W_SP)                         # already NCHW


def _reference(x, conv_w, conv_b, gamma, beta):
    """Plain-JAX reference of the PyTorch forward (training-mode BatchNorm)."""
    x = jnp.reshape(x, (-1, C_IN, H, W_SP)).astype(jnp.float32)
    conv = jax.lax.conv_general_dilated(
        x, conv_w.astype(jnp.float32), window_strides=(1, 1),
        padding=((1, 1), (1, 1)), dimension_numbers=("NCHW", "OIHW", "NCHW"))
    conv = conv + conv_b.reshape(1, C_OUT, 1, 1)
    mean = conv.mean(axis=(0, 2, 3), keepdims=True)
    var = ((conv - mean) ** 2).mean(axis=(0, 2, 3), keepdims=True)
    y = gamma.reshape(1, C_OUT, 1, 1) * (conv - mean) / jnp.sqrt(var + BN_EPS) \
        + beta.reshape(1, C_OUT, 1, 1)
    return jnp.maximum(y, 0.0)


if __name__ == "__main__":
    key = jax.random.PRNGKey(0)
    k_x, k_w, k_b, k_g, k_be = jax.random.split(key, 5)

    B = 2
    x = jax.random.normal(k_x, (B, C_IN, H, W_SP), dtype=jnp.float32)

    # deterministic synthetic parameters (shapes match nn.Conv2d(3,128,3) / nn.BatchNorm2d(128))
    fan_in = C_IN * KH * KW
    bound = 1.0 / np.sqrt(fan_in)
    conv_w = jax.random.uniform(k_w, (C_OUT, C_IN, KH, KW), minval=-bound, maxval=bound)
    conv_b = jax.random.uniform(k_b, (C_OUT,), minval=-bound, maxval=bound)
    gamma = jax.random.uniform(k_g, (C_OUT,), minval=0.5, maxval=1.5)
    beta = 0.1 * jax.random.normal(k_be, (C_OUT,))

    out = convolutional_block(x, conv_w, conv_b, gamma, beta)
    out = jax.block_until_ready(out)

    ref = jax.block_until_ready(_reference(x, conv_w, conv_b, gamma, beta))
    assert out.shape == (B, C_OUT, H, W_SP), out.shape
    np.testing.assert_allclose(np.asarray(out), np.asarray(ref), rtol=1e-4, atol=1e-4)

    print("KERNEL_OK")
</pallas_src>

<mosaic_0001>
module attributes {stable_mosaic.version = 11 : i64} {
  func.func @_conv_bn_relu_kernel(%arg0: i32, %arg1: i32, %arg2: memref<1xi32, #tpu.memory_space<smem>>, %arg3: memref<2x32x42xf32, #tpu.memory_space<vmem>>, %arg4: memref<128x32xf32, #tpu.memory_space<vmem>>, %arg5: memref<128x1xf32, #tpu.memory_space<vmem>>, %arg6: memref<128x1xf32, #tpu.memory_space<vmem>>, %arg7: memref<2x128x42xf32, #tpu.memory_space<vmem>>, %arg8: memref<128x1xf32, #tpu.memory_space<vmem>>, %arg9: memref<128x1xf32, #tpu.memory_space<vmem>>, %arg10: memref<128x1xf32, #tpu.memory_space<vmem>>, %arg11: memref<128x1xf32, #tpu.memory_space<vmem>>) attributes {dimension_semantics = [#tpu.dimension_semantics<arbitrary>, #tpu.dimension_semantics<arbitrary>], iteration_bounds = array<i64: 2, 1>, scalar_prefetch = 1 : i64, scratch_operands = 4 : i64, tpu.core_type = #tpu.core_type<tc>, window_params = [{transform_indices = @transform_0, window_bounds = array<i64: 2, 32, 42>}, {pipeline_mode = #tpu.pipeline_mode<synchronous>, transform_indices = @transform_1, window_bounds = array<i64: 128, 32>}, {pipeline_mode = #tpu.pipeline_mode<synchronous>, transform_indices = @transform_2, window_bounds = array<i64: 128, 1>}, {pipeline_mode = #tpu.pipeline_mode<synchronous>, transform_indices = @transform_3, window_bounds = array<i64: 128, 1>}, {transform_indices = @transform_4, window_bounds = array<i64: 2, 128, 42>}]} {
    %c0_i32 = arith.constant 0 : i32
    %0 = arith.cmpi eq, %arg0, %c0_i32 : i32
    %c0_i32_0 = arith.constant 0 : i32
    %1 = arith.cmpi eq, %arg1, %c0_i32_0 : i32
    %2 = arith.andi %0, %1 : i1
    %3 = arith.extui %2 : i1 to i32
    %c0_i32_1 = arith.constant 0 : i32
    %4 = arith.cmpi ne, %3, %c0_i32_1 : i32
    scf.if %4 {
      %cst = arith.constant 0.000000e+00 : f32
      %17 = vector.broadcast %cst : f32 to vector<128x1xf32>
      %c0_9 = arith.constant 0 : index
      %c0_10 = arith.constant 0 : index
      %18 = vector.load %arg8[%c0_9, %c0_10] : memref<128x1xf32, #tpu.memory_space<vmem>>, vector<128x1xf32>
      tpu.vector_store %arg8[%c0_9, %c0_10], %17 {strides = array<i32>} : memref<128x1xf32, #tpu.memory_space<vmem>>, vector<128x1xf32>,
      %cst_11 = arith.constant 0.000000e+00 : f32
      %19 = vector.broadcast %cst_11 : f32 to vector<128x1xf32>
      %c0_12 = arith.constant 0 : index
      %c0_13 = arith.constant 0 : index
      %20 = vector.load %arg9[%c0_12, %c0_13] : memref<128x1xf32, #tpu.memory_space<vmem>>, vector<128x1xf32>
      tpu.vector_store %arg9[%c0_12, %c0_13], %19 {strides = array<i32>} : memref<128x1xf32, #tpu.memory_space<vmem>>, vector<128x1xf32>,
    } else {
    }
    %c0 = arith.constant 0 : index
    %c0_2 = arith.constant 0 : index
    %5 = vector.load %arg4[%c0, %c0_2] : memref<128x32xf32, #tpu.memory_space<vmem>>, vector<128x32xf32>
    %c0_i32_3 = arith.constant 0 : i32
    %6 = arith.cmpi eq, %arg0, %c0_i32_3 : i32
    %7 = arith.extui %6 : i1 to i32
    %c0_i32_4 = arith.constant 0 : i32
    %8 = arith.cmpi ne, %7, %c0_i32_4 : i32
    scf.if %8 {
      %cst = arith.constant 0.000000e+00 : f32
      %17 = vector.broadcast %cst : f32 to vector<128x1xf32>
      %cst_9 = arith.constant 0.000000e+00 : f32
      %18 = vector.broadcast %cst_9 : f32 to vector<128x1xf32>
      %c0_10 = arith.constant 0 : index
      %c0_11 = arith.constant 0 : index
      %c0_12 = arith.constant 0 : index
      %19 = vector.load %arg3[%c0_10, %c0_11, %c0_12] : memref<2x32x42xf32, #tpu.memory_space<vmem>>, vector<1x32x42xf32>
      %20 = vector.shape_cast %19 : vector<1x32x42xf32> to vector<32x42xf32>
      %cst_13 = arith.constant dense<0.000000e+00> : vector<128x42xf32>
      %21 = tpu.matmul %5, %20, %cst_13 {dimension_numbers = #tpu.dot_dimension_numbers<[1], [0], [0], [1], [0, 0, 1, 1], [], []>} : vector<128x32xf32>, vector<32x42xf32>, vector<128x42xf32> -> vector<128x42xf32>
      %cst_14 = arith.constant dense<0.000000e+00> : vector<128xf32>
      %22 = vector.multi_reduction <add>, %21, %cst_14 [1] : vector<128x42xf32> to vector<128xf32>
      %23 = vector.shape_cast %22 : vector<128xf32> to vector<128x1xf32>
      %24 = arith.addf %17, %23 : vector<128x1xf32>
      %25 = arith.mulf %21, %21 : vector<128x42xf32>
      %cst_15 = arith.constant dense<0.000000e+00> : vector<128xf32>
      %26 = vector.multi_reduction <add>, %25, %cst_15 [1] : vector<128x42xf32> to vector<128xf32>
      %27 = vector.shape_cast %26 : vector<128xf32> to vector<128x1xf32>
      %28 = arith.addf %18, %27 : vector<128x1xf32>
      %c1 = arith.constant 1 : index
      %c0_16 = arith.constant 0 : index
      %c0_17 = arith.constant 0 : index
      %29 = vector.load %arg3[%c1, %c0_16, %c0_17] : memref<2x32x42xf32, #tpu.memory_space<vmem>>, vector<1x32x42xf32>
      %30 = vector.shape_cast %29 : vector<1x32x42xf32> to vector<32x42xf32>
      %cst_18 = arith.constant dense<0.000000e+00> : vector<128x42xf32>
      %31 = tpu.matmul %5, %30, %cst_18 {dimension_numbers = #tpu.dot_dimension_numbers<[1], [0], [0], [1], [0, 0, 1, 1], [], []>} : vector<128x32xf32>, vector<32x42xf32>, vector<128x42xf32> -> vector<128x42xf32>
      %cst_19 = arith.constant dense<0.000000e+00> : vector<128xf32>
      %32 = vector.multi_reduction <add>, %31, %cst_19 [1] : vector<128x42xf32> to vector<128xf32>
      %33 = vector.shape_cast %32 : vector<128xf32> to vector<128x1xf32>
      %34 = arith.addf %24, %33 : vector<128x1xf32>
      %35 = arith.mulf %31, %31 : vector<128x42xf32>
      %cst_20 = arith.constant dense<0.000000e+00> : vector<128xf32>
      %36 = vector.multi_reduction <add>, %35, %cst_20 [1] : vector<128x42xf32> to vector<128xf32>
      %37 = vector.shape_cast %36 : vector<128xf32> to vector<128x1xf32>
      %38 = arith.addf %28, %37 : vector<128x1xf32>
      %c0_21 = arith.constant 0 : index
      %c0_22 = arith.constant 0 : index
      %39 = vector.load %arg8[%c0_21, %c0_22] : memref<128x1xf32, #tpu.memory_space<vmem>>, vector<128x1xf32>
      %40 = arith.addf %39, %34 : vector<128x1xf32>
      %c0_23 = arith.constant 0 : index
      %c0_24 = arith.constant 0 : index
      %41 = vector.load %arg8[%c0_23, %c0_24] : memref<128x1xf32, #tpu.memory_space<vmem>>, vector<128x1xf32>
      tpu.vector_store %arg8[%c0_23, %c0_24], %40 {strides = array<i32>} : memref<128x1xf32, #tpu.memory_space<vmem>>, vector<128x1xf32>,
      %c0_25 = arith.constant 0 : index
      %c0_26 = arith.constant 0 : index
      %42 = vector.load %arg9[%c0_25, %c0_26] : memref<128x1xf32, #tpu.memory_space<vmem>>, vector<128x1xf32>
      %43 = arith.addf %42, %38 : vector<128x1xf32>
      %c0_27 = arith.constant 0 : index
      %c0_28 = arith.constant 0 : index
      %44 = vector.load %arg9[%c0_27, %c0_28] : memref<128x1xf32, #tpu.memory_space<vmem>>, vector<128x1xf32>
      tpu.vector_store %arg9[%c0_27, %c0_28], %43 {strides = array<i32>} : memref<128x1xf32, #tpu.memory_space<vmem>>, vector<128x1xf32>,
    } else {
    }
    %c0_i32_5 = arith.constant 0 : i32
    %9 = arith.cmpi eq, %arg0, %c0_i32_5 : i32
    %c0_i32_6 = arith.constant 0 : i32
    %10 = arith.cmpi eq, %arg1, %c0_i32_6 : i32
    %11 = arith.andi %9, %10 : i1
    %12 = arith.extui %11 : i1 to i32
    %c0_i32_7 = arith.constant 0 : i32
    %13 = arith.cmpi ne, %12, %c0_i32_7 : i32
    scf.if %13 {
      %c0_9 = arith.constant 0 : index
      %17 = memref.load %arg2[%c0_9] : memref<1xi32, #tpu.memory_space<smem>>
      %18 = arith.sitofp %17 : i32 to f32
      %c0_10 = arith.constant 0 : index
      %c0_11 = arith.constant 0 : index
      %19 = vector.load %arg8[%c0_10, %c0_11] : memref<128x1xf32, #tpu.memory_space<vmem>>, vector<128x1xf32>
      %20 = vector.broadcast %18 : f32 to vector<128x1xf32>
      %21 = arith.divf %19, %20 : vector<128x1xf32>
      %c0_12 = arith.constant 0 : index
      %c0_13 = arith.constant 0 : index
      %22 = vector.load %arg9[%c0_12, %c0_13] : memref<128x1xf32, #tpu.memory_space<vmem>>, vector<128x1xf32>
      %23 = vector.broadcast %18 : f32 to vector<128x1xf32>
      %24 = arith.divf %22, %23 : vector<128x1xf32>
      %25 = arith.mulf %21, %21 : vector<128x1xf32>
      %26 = arith.subf %24, %25 : vector<128x1xf32>
      %cst = arith.constant 9.99999974E-6 : f32
      %27 = vector.broadcast %cst : f32 to vector<128x1xf32>
      %28 = arith.addf %26, %27 : vector<128x1xf32>
      %29 = math.rsqrt %28 : vector<128x1xf32>
      %c0_14 = arith.constant 0 : index
      %c0_15 = arith.constant 0 : index
      %30 = vector.load %arg5[%c0_14, %c0_15] : memref<128x1xf32, #tpu.memory_space<vmem>>, vector<128x1xf32>
      %31 = arith.mulf %30, %29 : vector<128x1xf32>
      %c0_16 = arith.constant 0 : index
      %c0_17 = arith.constant 0 : index
      %32 = vector.load %arg10[%c0_16, %c0_17] : memref<128x1xf32, #tpu.memory_space<vmem>>, vector<128x1xf32>
      tpu.vector_store %arg10[%c0_16, %c0_17], %31 {strides = array<i32>} : memref<128x1xf32, #tpu.memory_space<vmem>>, vector<128x1xf32>,
      %c0_18 = arith.constant 0 : index
      %c0_19 = arith.constant 0 : index
      %33 = vector.load %arg6[%c0_18, %c0_19] : memref<128x1xf32, #tpu.memory_space<vmem>>, vector<128x1xf32>
      %34 = arith.mulf %31, %21 : vector<128x1xf32>
      %35 = arith.subf %33, %34 : vector<128x1xf32>
      %c0_20 = arith.constant 0 : index
      %c0_21 = arith.constant 0 : index
      %36 = vector.load %arg11[%c0_20, %c0_21] : memref<128x1xf32, #tpu.memory_space<vmem>>, vector<128x1xf32>
      tpu.vector_store %arg11[%c0_20, %c0_21], %35 {strides = array<i32>} : memref<128x1xf32, #tpu.memory_space<vmem>>, vector<128x1xf32>,
    } else {
    }
    %c1_i32 = arith.constant 1 : i32
    %14 = arith.cmpi eq, %arg0, %c1_i32 : i32
    %15 = arith.extui %14 : i1 to i32
    %c0_i32_8 = arith.constant 0 : i32
    %16 = arith.cmpi ne, %15, %c0_i32_8 : i32
    scf.if %16 {
      %c0_9 = arith.constant 0 : index
      %c0_10 = arith.constant 0 : index
      %17 = vector.load %arg10[%c0_9, %c0_10] : memref<128x1xf32, #tpu.memory_space<vmem>>, vector<128x1xf32>
      %c0_11 = arith.constant 0 : index
      %c0_12 = arith.constant 0 : index
      %18 = vector.load %arg11[%c0_11, %c0_12] : memref<128x1xf32, #tpu.memory_space<vmem>>, vector<128x1xf32>
      %c0_13 = arith.constant 0 : index
      %c0_14 = arith.constant 0 : index
      %c0_15 = arith.constant 0 : index
      %19 = vector.load %arg3[%c0_13, %c0_14, %c0_15] : memref<2x32x42xf32, #tpu.memory_space<vmem>>, vector<1x32x42xf32>
      %20 = vector.shape_cast %19 : vector<1x32x42xf32> to vector<32x42xf32>
      %cst = arith.constant dense<0.000000e+00> : vector<128x42xf32>
      %21 = tpu.matmul %5, %20, %cst {dimension_numbers = #tpu.dot_dimension_numbers<[1], [0], [0], [1], [0, 0, 1, 1], [], []>} : vector<128x32xf32>, vector<32x42xf32>, vector<128x42xf32> -> vector<128x42xf32>
      %22 = vector.broadcast %17 : vector<128x1xf32> to vector<128x42xf32>
      %23 = arith.mulf %21, %22 : vector<128x42xf32>
      %24 = vector.broadcast %18 : vector<128x1xf32> to vector<128x42xf32>
      %25 = arith.addf %23, %24 : vector<128x42xf32>
      %cst_16 = arith.constant 0.000000e+00 : f32
      %26 = vector.broadcast %cst_16 : f32 to vector<128x42xf32>
      %27 = arith.maximumf %25, %26 : vector<128x42xf32>
      %c0_17 = arith.constant 0 : index
      %c0_18 = arith.constant 0 : index
      %c0_19 = arith.constant 0 : index
      %28 = vector.load %arg7[%c0_17, %c0_18, %c0_19] : memref<2x128x42xf32, #tpu.memory_space<vmem>>, vector<1x128x42xf32>
      %29 = vector.shape_cast %28 : vector<1x128x42xf32> to vector<128x42xf32>
      %30 = vector.shape_cast %27 : vector<128x42xf32> to vector<1x128x42xf32>
      tpu.vector_store %arg7[%c0_17, %c0_18, %c0_19], %30 {strides = array<i32>} : memref<2x128x42xf32, #tpu.memory_space<vmem>>, vector<1x128x42xf32>,
      %c1 = arith.constant 1 : index
      %c0_20 = arith.constant 0 : index
      %c0_21 = arith.constant 0 : index
      %31 = vector.load %arg3[%c1, %c0_20, %c0_21] : memref<2x32x42xf32, #tpu.memory_space<vmem>>, vector<1x32x42xf32>
      %32 = vector.shape_cast %31 : vector<1x32x42xf32> to vector<32x42xf32>
      %cst_22 = arith.constant dense<0.000000e+00> : vector<128x42xf32>
      %33 = tpu.matmul %5, %32, %cst_22 {dimension_numbers = #tpu.dot_dimension_numbers<[1], [0], [0], [1], [0, 0, 1, 1], [], []>} : vector<128x32xf32>, vector<32x42xf32>, vector<128x42xf32> -> vector<128x42xf32>
      %34 = vector.broadcast %17 : vector<128x1xf32> to vector<128x42xf32>
      %35 = arith.mulf %33, %34 : vector<128x42xf32>
      %36 = vector.broadcast %18 : vector<128x1xf32> to vector<128x42xf32>
      %37 = arith.addf %35, %36 : vector<128x42xf32>
      %cst_23 = arith.constant 0.000000e+00 : f32
      %38 = vector.broadcast %cst_23 : f32 to vector<128x42xf32>
      %39 = arith.maximumf %37, %38 : vector<128x42xf32>
      %c1_24 = arith.constant 1 : index
      %c0_25 = arith.constant 0 : index
      %c0_26 = arith.constant 0 : index
      %40 = vector.load %arg7[%c1_24, %c0_25, %c0_26] : memref<2x128x42xf32, #tpu.memory_space<vmem>>, vector<1x128x42xf32>
      %41 = vector.shape_cast %40 : vector<1x128x42xf32> to vector<128x42xf32>
      %42 = vector.shape_cast %39 : vector<128x42xf32> to vector<1x128x42xf32>
      tpu.vector_store %arg7[%c1_24, %c0_25, %c0_26], %42 {strides = array<i32>} : memref<2x128x42xf32, #tpu.memory_space<vmem>>, vector<1x128x42xf32>,
    } else {
    }
    return
  }
  func.func @transform_0(%arg0: i32, %arg1: i32, %arg2: memref<1xi32, #tpu.memory_space<smem>>) -> (i32, i32, i32) {
    %c0_i32 = arith.constant 0 : i32
    %c0_i32_0 = arith.constant 0 : i32
    %c0_i32_1 = arith.constant 0 : i32
    return %arg1, %c0_i32, %c0_i32_0 : i32, i32, i32
  }
  func.func @transform_1(%arg0: i32, %arg1: i32, %arg2: memref<1xi32, #tpu.memory_space<smem>>) -> (i32, i32) {
    %c0_i32 = arith.constant 0 : i32
    %c0_i32_0 = arith.constant 0 : i32
    %c0_i32_1 = arith.constant 0 : i32
    return %c0_i32, %c0_i32_0 : i32, i32
  }
  func.func @transform_2(%arg0: i32, %arg1: i32, %arg2: memref<1xi32, #tpu.memory_space<smem>>) -> (i32, i32) {
    %c0_i32 = arith.constant 0 : i32
    %c0_i32_0 = arith.constant 0 : i32
    %c0_i32_1 = arith.constant 0 : i32
    return %c0_i32, %c0_i32_0 : i32, i32
  }
  func.func @transform_3(%arg0: i32, %arg1: i32, %arg2: memref<1xi32, #tpu.memory_space<smem>>) -> (i32, i32) {
    %c0_i32 = arith.constant 0 : i32
    %c0_i32_0 = arith.constant 0 : i32
    %c0_i32_1 = arith.constant 0 : i32
    return %c0_i32, %c0_i32_0 : i32, i32
  }
  func.func @transform_4(%arg0: i32, %arg1: i32, %arg2: memref<1xi32, #tpu.memory_space<smem>>) -> (i32, i32, i32) {
    %0 = arith.muli %arg0, %arg1 : i32
    %c0_i32 = arith.constant 0 : i32
    %c0_i32_0 = arith.constant 0 : i32
    %c0_i32_1 = arith.constant 0 : i32
    return %0, %c0_i32, %c0_i32_0 : i32, i32, i32
  }
}

</mosaic_0001>

<llo_original>
// kernel: tpu_custom_call.1
$region0: #{tpu_custom_call.1}
  #allocation0 [shape = 'u32[]', space=smem, size = 0x4, offset = 0x4, fixed_abs, tag = 'smem constant byte address 0x4 - core index']
  #allocation1 [shape = 'u32[72,128]{1,0:T(1,128)}', space=vmem, size = 0x9000, scoped, tag = 'internal scratch']
  #allocation2 [shape = 'f32[128,1]{1,0:T(8,128)}', space=vmem, size = 0x10000, scoped, tag = 'scratch operand']
  #allocation3 [shape = 'f32[128,1]{1,0:T(8,128)}', space=vmem, size = 0x10000, scoped, tag = 'scratch operand']
  #allocation4 [shape = 'f32[128,1]{1,0:T(8,128)}', space=vmem, size = 0x10000, scoped, tag = 'scratch operand']
  #allocation5 [shape = 'f32[128,1]{1,0:T(8,128)}', space=vmem, size = 0x10000, scoped, tag = 'scratch operand']
  #allocation6 [shape = 's32[1]{0}', space=sflag, size = 0x4, scoped, tag = 'scoped memory for tpu_custom_call.1']
  #allocation7 [shape = 's32[1]{0:T(128)S(6)}', space=smem, size = 0x200, scoped, tag = 'prefetched SMEM operand 0']
  %s0 = inlined_call_operand.<no memory space> [shape: s32[1], index: 0, kind: input, shape index: {}]
  %s1 = inlined_call_operand.vmem [shape: f32[2,32,42], index: 1, kind: input, shape index: {}]
  %s2 = inlined_call_operand.vmem [shape: f32[128,32], index: 2, kind: input, shape index: {}]
  %s3 = inlined_call_operand.vmem [shape: f32[128,1], index: 3, kind: input, shape index: {}]
  %s4 = inlined_call_operand.vmem [shape: f32[128,1], index: 4, kind: input, shape index: {}]
  %s5 = inlined_call_operand.vmem [shape: f32[2,128,42], index: 5, kind: output, shape index: {}]
  %s6 = sld [smem:[#allocation0]]
  $region65: #{tpu_custom_call.1} parent=0
    _
  %s8 = ssub.s32 1, %s6
  %s9 = scalar_select 0, %s8, %s6
  %10 = sst [smem:[#allocation7]] %s0
  loop: start=0, step=1, limit=4
  $region2: #{tpu_custom_call.1} parent=0 // loop_pre_header
    _
  $region3: #{tpu_custom_call.1} parent=0 // loop_header
    %s12 = sphi 0, %s16
    %p13 = scmp.ge.s32.totalorder %s12, 4
    %s19 = sphi 0, %s31
    %s20 = sphi 0, %s27
    %s21 = sphi 0, %s19
    %s22 = sphi 0, %s20
    %s23 = sphi 0, %s21
    %s24 = sphi 0, %s22
    %s34 = sphi 0, %s36
    %s37 = sphi 0, %s34
    %s38 = sphi 0, %s37
    %s54 = sphi 0, %s38
    %s58 = sphi 0, %s58
    %s60 = sphi 0, %s58
    %s61 = sphi 0, %s60
    %s75 = sphi 0, %s61
    %s79 = sphi 0, %s79
    %s81 = sphi 0, %s79
    %s82 = sphi 0, %s81
    %s96 = sphi 0, %s82
    %s100 = sphi 0, %s100
    %s102 = sphi 0, %s100
    %s103 = sphi 0, %s102
    %s117 = sphi 0, %s103
    %s125 = sphi 0, %s127
    %s128 = sphi 0, %s125
    %s129 = sphi 0, %s128
    %s145 = sphi 0, %s129
  $region4: #{tpu_custom_call.1} parent=0 // loop_header_branch
    %15 = sbr.rel (%p13) target = $region8
  $region5: #{tpu_custom_call.1} parent=0 // loop_body
    %s17 = ssub.s32 %s12, 1
    %s18 = ssub.s32 %s12, 2
    %s25 = sadd.s32 1, %s20
    %p26 = scmp.ge.s32.totalorder %s25, 1
    %s27 = scalar_select %p26, 0, %s25
    %s28 = sadd.s32 1, %s19
    %s29 = scalar_select %p26, %s28, %s19
    %p30 = scmp.ge.s32.totalorder %s29, 2
    %s31 = scalar_select %p30, 0, %s29
    %s32 = ssub.s32 %s20, %s27
    %p33 = scmp.eq.s32.totalorder %s32, 0
    %s35 = sadd.s32 %s34, 1
    %s36 = scalar_select %p33, %s34, %s35
    %p39 = pneg %p33
    %p40 = scmp.eq.s32.totalorder %s12, 1
    %p41 = por %p39, %p40
    %p42 = scmp.ne.s32.totalorder %s34, %s37
    %p43 = scmp.eq.s32.totalorder %s12, 0
    %p44 = por %p42, %p43
    %p45 = scmp.ne.s32.totalorder %s34, %s37
    %p46 = scmp.eq.s32.totalorder %s17, 1
    %p47 = por %p45, %p46
    %p48 = scmp.ne.s32.totalorder %s37, %s38
    %p49 = scmp.eq.s32.totalorder %s17, 0
    %p50 = por %p48, %p49
    %p51 = scmp.ne.s32.totalorder %s37, %s38
    %p52 = scmp.eq.s32.totalorder %s18, 1
    %p53 = por %p51, %p52
    %p55 = scmp.ne.s32.totalorder %s38, %s54
    %p56 = scmp.eq.s32.totalorder %s18, 0
    %p57 = por %p55, %p56
    %s59 = sadd.s32 %s58, 1
    %p62 = scmp.eq.s32.totalorder %s12, 1
    %p63 = scmp.ne.s32.totalorder %s58, %s60
    %p64 = scmp.eq.s32.totalorder %s12, 0
    %p65 = por %p63, %p64
    %p66 = scmp.ne.s32.totalorder %s58, %s60
    %p67 = scmp.eq.s32.totalorder %s17, 1
    %p68 = por %p66, %p67
    %p69 = scmp.ne.s32.totalorder %s60, %s61
    %p70 = scmp.eq.s32.totalorder %s17, 0
    %p71 = por %p69, %p70
    %p72 = scmp.ne.s32.totalorder %s60, %s61
    %p73 = scmp.eq.s32.totalorder %s18, 1
    %p74 = por %p72, %p73
    %p76 = scmp.ne.s32.totalorder %s61, %s75
    %p77 = scmp.eq.s32.totalorder %s18, 0
    %p78 = por %p76, %p77
    %s80 = sadd.s32 %s79, 1
    %p83 = scmp.eq.s32.totalorder %s12, 1
    %p84 = scmp.ne.s32.totalorder %s79, %s81
    %p85 = scmp.eq.s32.totalorder %s12, 0
    %p86 = por %p84, %p85
    %p87 = scmp.ne.s32.totalorder %s79, %s81
    %p88 = scmp.eq.s32.totalorder %s17, 1
    %p89 = por %p87, %p88
    %p90 = scmp.ne.s32.totalorder %s81, %s82
    %p91 = scmp.eq.s32.totalorder %s17, 0
    %p92 = por %p90, %p91
    %p93 = scmp.ne.s32.totalorder %s81, %s82
    %p94 = scmp.eq.s32.totalorder %s18, 1
    %p95 = por %p93, %p94
    %p97 = scmp.ne.s32.totalorder %s82, %s96
    %p98 = scmp.eq.s32.totalorder %s18, 0
    %p99 = por %p97, %p98
    %s101 = sadd.s32 %s100, 1
    %p104 = scmp.eq.s32.totalorder %s12, 1
    %p105 = scmp.ne.s32.totalorder %s100, %s102
    %p106 = scmp.eq.s32.totalorder %s12, 0
    %p107 = por %p105, %p106
    %p108 = scmp.ne.s32.totalorder %s100, %s102
    %p109 = scmp.eq.s32.totalorder %s17, 1
    %p110 = por %p108, %p109
    %p111 = scmp.ne.s32.totalorder %s102, %s103
    %p112 = scmp.eq.s32.totalorder %s17, 0
    %p113 = por %p111, %p112
    %p114 = scmp.ne.s32.totalorder %s102, %s103
    %p115 = scmp.eq.s32.totalorder %s18, 1
    %p116 = por %p114, %p115
    %p118 = scmp.ne.s32.totalorder %s103, %s117
    %p119 = scmp.eq.s32.totalorder %s18, 0
    %p120 = por %p118, %p119
    %s121 = smul.u32 %s19, %s20
    %s122 = smul.u32 %s31, %s27
    %s123 = ssub.s32 %s121, %s122
    %p124 = scmp.eq.s32.totalorder %s123, 0
    %s126 = sadd.s32 %s125, 1
    %s127 = scalar_select %p124, %s125, %s126
    %p130 = pneg %p124
    %p131 = scmp.eq.s32.totalorder %s12, 1
    %p132 = por %p130, %p131
    %p133 = scmp.ne.s32.totalorder %s125, %s128
    %p134 = scmp.eq.s32.totalorder %s12, 0
    %p135 = por %p133, %p134
    %p136 = scmp.ne.s32.totalorder %s125, %s128
    %p137 = scmp.eq.s32.totalorder %s17, 1
    %p138 = por %p136, %p137
    %p139 = scmp.ne.s32.totalorder %s128, %s129
    %p140 = scmp.eq.s32.totalorder %s17, 0
    %p141 = por %p139, %p140
    %p142 = scmp.ne.s32.totalorder %s128, %s129
    %p143 = scmp.eq.s32.totalorder %s18, 1
    %p144 = por %p142, %p143
    %p146 = scmp.ne.s32.totalorder %s129, %s145
    %p147 = scmp.eq.s32.totalorder %s18, 0
    %p148 = por %p146, %p147
    %p149 = scmp.le.s32.totalorder 1, %s12
    %p150 = scmp.lt.s32.totalorder %s12, 3
    %p151 = pnand %p149, %p150
    %p152 = pneg %p151
    // Predicated region
    $region9: #{tpu_custom_call.1} parent=5 // pred_check
      _
    $region10: #{tpu_custom_call.1} parent=5 // pred_check_branch
      %154 = sbr.rel (%p151) target = $region12
    $region11: #{tpu_custom_call.1} parent=5 // pred_region
      %s155 = ssub.s32 %s12, 1
      // Predicated region
      $region13: #{tpu_custom_call.1} parent=11 // pred_check
        %p156 = pneg %p50
      $region14: #{tpu_custom_call.1} parent=11 // pred_check_branch
        %158 = sbr.rel (%p156) target = $region16
      $region15: #{tpu_custom_call.1} parent=11 // pred_region
        %s159 = smul.u32 2, %s22
        %p160 = scmp.lt.s32.totalorder %s159, 1
        %s161 = scalar_select %p160, %s159, 1
        %s162 = smul.addr %s161, 4
        %s163 = smul.addr %s162, 8
        %s164 = scalar_lea.vmem %s1, %s163
        %s165 = smul.u32 2, %s22
      $region16: #{tpu_custom_call.1} parent=11 // pred_fallthru
        _
      // Predicated region
      $region17: #{tpu_custom_call.1} parent=11 // pred_check
        %p166 = pneg %p71
      $region18: #{tpu_custom_call.1} parent=11 // pred_check_branch
        %168 = sbr.rel (%p166) target = $region20
      $region19: #{tpu_custom_call.1} parent=11 // pred_region
        _
      $region20: #{tpu_custom_call.1} parent=11 // pred_fallthru
        _
      // Predicated region
      $region21: #{tpu_custom_call.1} parent=11 // pred_check
        %p169 = pneg %p92
      $region22: #{tpu_custom_call.1} parent=11 // pred_check_branch
        %171 = sbr.rel (%p169) target = $region24
      $region23: #{tpu_custom_call.1} parent=11 // pred_region
        _
      $region24: #{tpu_custom_call.1} parent=11 // pred_fallthru
        _
      // Predicated region
      $region25: #{tpu_custom_call.1} parent=11 // pred_check
        %p172 = pneg %p113
      $region26: #{tpu_custom_call.1} parent=11 // pred_check_branch
        %174 = sbr.rel (%p172) target = $region28
      $region27: #{tpu_custom_call.1} parent=11 // pred_region
        _
      $region28: #{tpu_custom_call.1} parent=11 // pred_fallthru
        _
    $region12: #{tpu_custom_call.1} parent=5 // pred_fallthru
      _
    %p175 = scmp.lt.s32.totalorder %s12, 2
    // Predicated region
    $region29: #{tpu_custom_call.1} parent=5 // pred_check
      %p176 = pneg %p175
    $region30: #{tpu_custom_call.1} parent=5 // pred_check_branch
      %178 = sbr.rel (%p176) target = $region32
    $region31: #{tpu_custom_call.1} parent=5 // pred_region
      _
    $region32: #{tpu_custom_call.1} parent=5 // pred_fallthru
      _
    %p179 = scmp.le.s32.totalorder 1, %s12
    %p180 = scmp.lt.s32.totalorder %s12, 3
    %p181 = pnand %p179, %p180
    %p182 = pneg %p181
    // Predicated region
    $region33: #{tpu_custom_call.1} parent=5 // pred_check
      _
    $region34: #{tpu_custom_call.1} parent=5 // pred_check_branch
      %184 = sbr.rel (%p181) target = $region36
    $region35: #{tpu_custom_call.1} parent=5 // pred_region
      %s185 = ssub.s32 %s12, 1
      %s186 = smul.u32 2, %s22
      %p187 = scmp.lt.s32.totalorder %s186, 1
      %s188 = scalar_select %p187, %s186, 1
      %s189 = smul.addr %s188, 4
      %s190 = smul.addr %s189, 8
      %s191 = scalar_lea.vmem %s1, %s190
      %p192 = pneg %p50
      %p193 = pneg %p47
      %p194 = pneg %p71
      %p195 = pneg %p68
      %p196 = pneg %p92
      %p197 = pneg %p89
      %p198 = pneg %p113
      %p199 = pneg %p110
      %p200 = pneg %p141
      %p201 = pneg %p138
      %s202 = smul.u32 %s21, %s22
      %s203 = smul.u32 2, %s202
      %p204 = scmp.lt.s32.totalorder %s203, 1
      %s205 = scalar_select %p204, %s203, 1
      %s206 = smul.addr %s205, 16
      %s207 = smul.addr %s206, 8
      %s208 = scalar_lea.vmem %s5, %s207
      %s209 = smul.u32 2, %s22
      %p210 = scmp.lt.s32.totalorder %s209, 1
      %s211 = scalar_select %p210, %s209, 1
      %s212 = smul.addr %s211, 4
      %s213 = smul.addr %s212, 8
      %s214 = scalar_lea.vmem %s1, %s213
      %s215 = smul.u32 2, %s22
      %s216 = smul.u32 %s21, %s22
      %s217 = smul.u32 2, %s216
      %p218 = scmp.lt.s32.totalorder %s217, 1
      %s219 = scalar_select %p218, %s217, 1
      %s220 = smul.addr %s219, 16
      %s221 = smul.addr %s220, 8
      %s222 = scalar_lea.vmem %s5, %s221
      %s223 = smul.u32 %s21, %s22
      %s224 = smul.u32 2, %s223
      %p225 = scmp.eq.s32.totalorder %s21, 0
      %p226 = scmp.eq.s32.totalorder %s22, 0
      %p227 = pnand %p225, %p226
      %p228 = pneg %p227
      // Predicated region
      $region37: #{tpu_custom_call.1} parent=35 // pred_check
        _
      $region38: #{tpu_custom_call.1} parent=35 // pred_check_branch
        %230 = sbr.rel (%p227) target = $region40
      $region39: #{tpu_custom_call.1} parent=35 // pred_region
        %vm231 = vcmask 7168
        %232 = vst.msk [vmem:[#allocation2] sm:$0xff] %vm231, 0.0
        %233 = vst.msk [vmem:[#allocation2 + $0x8] sm:$0xff] %vm231, 0.0
        %234 = vst.msk [vmem:[#allocation2 + $0x10] sm:$0xff] %vm231, 0.0
        %235 = vst.msk [vmem:[#allocation2 + $0x18] sm:$0xff] %vm231, 0.0
        %236 = vst.msk [vmem:[#allocation2 + $0x20] sm:$0xff] %vm231, 0.0
        %237 = vst.msk [vmem:[#allocation2 + $0x28] sm:$0xff] %vm231, 0.0
        %238 = vst.msk [vmem:[#allocation2 + $0x30] sm:$0xff] %vm231, 0.0
        %239 = vst.msk [vmem:[#allocation2 + $0x38] sm:$0xff] %vm231, 0.0
        %240 = vst.msk [vmem:[#allocation2 + $0x40] sm:$0xff] %vm231, 0.0
        %241 = vst.msk [vmem:[#allocation2 + $0x48] sm:$0xff] %vm231, 0.0
        %242 = vst.msk [vmem:[#allocation2 + $0x50] sm:$0xff] %vm231, 0.0
        %243 = vst.msk [vmem:[#allocation2 + $0x58] sm:$0xff] %vm231, 0.0
        %244 = vst.msk [vmem:[#allocation2 + $0x60] sm:$0xff] %vm231, 0.0
        %245 = vst.msk [vmem:[#allocation2 + $0x68] sm:$0xff] %vm231, 0.0
        %246 = vst.msk [vmem:[#allocation2 + $0x70] sm:$0xff] %vm231, 0.0
        %247 = vst.msk [vmem:[#allocation2 + $0x78] sm:$0xff] %vm231, 0.0
        %248 = vst.msk [vmem:[#allocation3] sm:$0xff] %vm231, 0.0
        %249 = vst.msk [vmem:[#allocation3 + $0x8] sm:$0xff] %vm231, 0.0
        %250 = vst.msk [vmem:[#allocation3 + $0x10] sm:$0xff] %vm231, 0.0
        %251 = vst.msk [vmem:[#allocation3 + $0x18] sm:$0xff] %vm231, 0.0
        %252 = vst.msk [vmem:[#allocation3 + $0x20] sm:$0xff] %vm231, 0.0
        %253 = vst.msk [vmem:[#allocation3 + $0x28] sm:$0xff] %vm231, 0.0
        %254 = vst.msk [vmem:[#allocation3 + $0x30] sm:$0xff] %vm231, 0.0
        %255 = vst.msk [vmem:[#allocation3 + $0x38] sm:$0xff] %vm231, 0.0
        %256 = vst.msk [vmem:[#allocation3 + $0x40] sm:$0xff] %vm231, 0.0
        %257 = vst.msk [vmem:[#allocation3 + $0x48] sm:$0xff] %vm231, 0.0
        %258 = vst.msk [vmem:[#allocation3 + $0x50] sm:$0xff] %vm231, 0.0
        %259 = vst.msk [vmem:[#allocation3 + $0x58] sm:$0xff] %vm231, 0.0
        %260 = vst.msk [vmem:[#allocation3 + $0x60] sm:$0xff] %vm231, 0.0
        %261 = vst.msk [vmem:[#allocation3 + $0x68] sm:$0xff] %vm231, 0.0
        %262 = vst.msk [vmem:[#allocation3 + $0x70] sm:$0xff] %vm231, 0.0
        %263 = vst.msk [vmem:[#allocation3 + $0x78] sm:$0xff] %vm231, 0.0
      $region40: #{tpu_custom_call.1} parent=35 // pred_fallthru
        _
      %v264 = vld [vmem:[%s2] sm:$0xff]
      %v265 = vld [vmem:[%s2 + $0x8] sm:$0xff]
      %v266 = vld [vmem:[%s2 + $0x10] sm:$0xff]
      %v267 = vld [vmem:[%s2 + $0x18] sm:$0xff]
      %v268 = vld [vmem:[%s2 + $0x20] sm:$0xff]
      %v269 = vld [vmem:[%s2 + $0x28] sm:$0xff]
      %v270 = vld [vmem:[%s2 + $0x30] sm:$0xff]
      %v271 = vld [vmem:[%s2 + $0x38] sm:$0xff]
      %v272 = vld [vmem:[%s2 + $0x40] sm:$0xff]
      %v273 = vld [vmem:[%s2 + $0x48] sm:$0xff]
      %v274 = vld [vmem:[%s2 + $0x50] sm:$0xff]
      %v275 = vld [vmem:[%s2 + $0x58] sm:$0xff]
      %v276 = vld [vmem:[%s2 + $0x60] sm:$0xff]
      %v277 = vld [vmem:[%s2 + $0x68] sm:$0xff]
      %v278 = vld [vmem:[%s2 + $0x70] sm:$0xff]
      %v279 = vld [vmem:[%s2 + $0x78] sm:$0xff]
      // Predicated region
      $region41: #{tpu_custom_call.1} parent=35 // pred_check
        %p280 = pneg %p225
      $region42: #{tpu_custom_call.1} parent=35 // pred_check_branch
        %282 = sbr.rel (%p280) target = $region44
      $region43: #{tpu_custom_call.1} parent=35 // pred_region
        %v283 = vld [vmem:[%s214] sm:$0xff]
        %v284 = vld [vmem:[%s214 + $0x8] sm:$0xff]
        %v285 = vld [vmem:[%s214 + $0x10] sm:$0xff]
        %v286 = vld [vmem:[%s214 + $0x18] sm:$0xff]
        %vm287 = vcmask 261120
        %v289 = vsel %vm287, %v264, 0
        %v292 = vsel %vm287, %v265, 0
        %v295 = vsel %vm287, %v266, 0
        %v298 = vsel %vm287, %v267, 0
        %v301 = vsel %vm287, %v268, 0
        %v304 = vsel %vm287, %v269, 0
        %v307 = vsel %vm287, %v270, 0
        %v310 = vsel %vm287, %v271, 0
        %v313 = vsel %vm287, %v272, 0
        %v316 = vsel %vm287, %v273, 0
        %v319 = vsel %vm287, %v274, 0
        %v322 = vsel %vm287, %v275, 0
        %v325 = vsel %vm287, %v276, 0
        %v328 = vsel %vm287, %v277, 0
        %v331 = vsel %vm287, %v278, 0
        %v334 = vsel %vm287, %v279, 0
        %336 = vmatpush.msra.mxu0 0.0
        %337 = vmatpush.msra.mxu0 0.0
        %338 = vmatpush.msra.mxu0 0.0
        %339 = vmatpush.msra.mxu0 0.0
        %340 = vmatpush.msra.mxu0 0.0
        %341 = vmatpush.msra.mxu0 0.0
        %342 = vmatpush.msra.mxu0 0.0
        %343 = vmatpush.msra.mxu0 0.0
        %344 = vmatpush.msra.mxu0 0.0
        %345 = vmatpush.msra.mxu0 0.0
        %346 = vmatpush.msra.mxu0 0.0
        %347 = vmatpush.msra.mxu0 0.0
        %348 = vmatpush.msra.mxu0 %v286
        %349 = vmatpush.msra.mxu0 %v285
        %350 = vmatpush.msra.mxu0 %v284
        %351 = vmatpush.msra.mxu0 %v283
        %352 = vmatmul.f32.gmra.mxu0 %v289
        %v353 = vpop.f32.mrf.mxu0
        %v354 = vadd.f32 0.0, %v353
        %355 = vmatmul.f32.gmra.mxu0 %v292
        %v356 = vpop.f32.mrf.mxu0
        %v357 = vadd.f32 0.0, %v356
        %358 = vmatmul.f32.gmra.mxu0 %v295
        %v359 = vpop.f32.mrf.mxu0
        %v360 = vadd.f32 0.0, %v359
        %361 = vmatmul.f32.gmra.mxu0 %v298
        %v362 = vpop.f32.mrf.mxu0
        %v363 = vadd.f32 0.0, %v362
        %364 = vmatmul.f32.gmra.mxu0 %v301
        %v365 = vpop.f32.mrf.mxu0
        %v366 = vadd.f32 0.0, %v365
        %367 = vmatmul.f32.gmra.mxu0 %v304
        %v368 = vpop.f32.mrf.mxu0
        %v369 = vadd.f32 0.0, %v368
        %370 = vmatmul.f32.gmra.mxu0 %v307
        %v371 = vpop.f32.mrf.mxu0
        %v372 = vadd.f32 0.0, %v371
        %373 = vmatmul.f32.gmra.mxu0 %v310
        %v374 = vpop.f32.mrf.mxu0
        %v375 = vadd.f32 0.0, %v374
        %376 = vmatmul.f32.gmra.mxu0 %v313
        %v377 = vpop.f32.mrf.mxu0
        %v378 = vadd.f32 0.0, %v377
        %379 = vmatmul.f32.gmra.mxu0 %v316
        %v380 = vpop.f32.mrf.mxu0
        %v381 = vadd.f32 0.0, %v380
        %382 = vmatmul.f32.gmra.mxu0 %v319
        %v383 = vpop.f32.mrf.mxu0
        %v384 = vadd.f32 0.0, %v383
        %385 = vmatmul.f32.gmra.mxu0 %v322
        %v386 = vpop.f32.mrf.mxu0
        %v387 = vadd.f32 0.0, %v386
        %388 = vmatmul.f32.gmra.mxu0 %v325
        %v389 = vpop.f32.mrf.mxu0
        %v390 = vadd.f32 0.0, %v389
        %391 = vmatmul.f32.gmra.mxu0 %v328
        %v392 = vpop.f32.mrf.mxu0
        %v393 = vadd.f32 0.0, %v392
        %394 = vmatmul.f32.gmra.mxu0 %v331
        %v395 = vpop.f32.mrf.mxu0
        %v396 = vadd.f32 0.0, %v395
        %397 = vmatmul.f32.gmra.mxu0 %v334
        %v398 = vpop.f32.mrf.mxu0
        %v399 = vadd.f32 0.0, %v398
        %400 = vdwg.mxu0
        %vm401 = vcmask 343040
        %v402 = vsel %vm401, %v354, 0.0
        %403 = vadd.xlane.f32.xlu0 %v402
        %v404 = vpop.xlane.xlu0 %403
        %v405 = vsel %vm401, %v357, 0.0
        %406 = vadd.xlane.f32.xlu0 %v405
        %v407 = vpop.xlane.xlu0 %406
        %v408 = vsel %vm401, %v360, 0.0
        %409 = vadd.xlane.f32.xlu0 %v408
        %v410 = vpop.xlane.xlu0 %409
        %v411 = vsel %vm401, %v363, 0.0
        %412 = vadd.xlane.f32.xlu0 %v411
        %v413 = vpop.xlane.xlu0 %412
        %v414 = vsel %vm401, %v366, 0.0
        %415 = vadd.xlane.f32.xlu0 %v414
        %v416 = vpop.xlane.xlu0 %415
        %v417 = vsel %vm401, %v369, 0.0
        %418 = vadd.xlane.f32.xlu0 %v417
        %v419 = vpop.xlane.xlu0 %418
        %v420 = vsel %vm401, %v372, 0.0
        %421 = vadd.xlane.f32.xlu0 %v420
        %v422 = vpop.xlane.xlu0 %421
        %v423 = vsel %vm401, %v375, 0.0
        %424 = vadd.xlane.f32.xlu0 %v423
        %v425 = vpop.xlane.xlu0 %424
        %v426 = vsel %vm401, %v378, 0.0
        %427 = vadd.xlane.f32.xlu0 %v426
        %v428 = vpop.xlane.xlu0 %427
        %v429 = vsel %vm401, %v381, 0.0
        %430 = vadd.xlane.f32.xlu0 %v429
        %v431 = vpop.xlane.xlu0 %430
        %v432 = vsel %vm401, %v384, 0.0
        %433 = vadd.xlane.f32.xlu0 %v432
        %v434 = vpop.xlane.xlu0 %433
        %v435 = vsel %vm401, %v387, 0.0
        %436 = vadd.xlane.f32.xlu0 %v435
        %v437 = vpop.xlane.xlu0 %436
        %v438 = vsel %vm401, %v390, 0.0
        %439 = vadd.xlane.f32.xlu0 %v438
        %v440 = vpop.xlane.xlu0 %439
        %v441 = vsel %vm401, %v393, 0.0
        %442 = vadd.xlane.f32.xlu0 %v441
        %v443 = vpop.xlane.xlu0 %442
        %v444 = vsel %vm401, %v396, 0.0
        %445 = vadd.xlane.f32.xlu0 %v444
        %v446 = vpop.xlane.xlu0 %445
        %v447 = vsel %vm401, %v399, 0.0
        %448 = vadd.xlane.f32.xlu0 %v447
        %v449 = vpop.xlane.xlu0 %448
        %v450 = vadd.f32 %v404, 0.0
        %v451 = vadd.f32 %v407, 0.0
        %v452 = vadd.f32 %v410, 0.0
        %v453 = vadd.f32 %v413, 0.0
        %v454 = vadd.f32 %v416, 0.0
        %v455 = vadd.f32 %v419, 0.0
        %v456 = vadd.f32 %v422, 0.0
        %v457 = vadd.f32 %v425, 0.0
        %v458 = vadd.f32 %v428, 0.0
        %v459 = vadd.f32 %v431, 0.0
        %v460 = vadd.f32 %v434, 0.0
        %v461 = vadd.f32 %v437, 0.0
        %v462 = vadd.f32 %v440, 0.0
        %v463 = vadd.f32 %v443, 0.0
        %v464 = vadd.f32 %v446, 0.0
        %v465 = vadd.f32 %v449, 0.0
        %v466 = vmul.f32 %v354, %v354
        %v467 = vmul.f32 %v357, %v357
        %v468 = vmul.f32 %v360, %v360
        %v469 = vmul.f32 %v363, %v363
        %v470 = vmul.f32 %v366, %v366
        %v471 = vmul.f32 %v369, %v369
        %v472 = vmul.f32 %v372, %v372
        %v473 = vmul.f32 %v375, %v375
        %v474 = vmul.f32 %v378, %v378
        %v475 = vmul.f32 %v381, %v381
        %v476 = vmul.f32 %v384, %v384
        %v477 = vmul.f32 %v387, %v387
        %v478 = vmul.f32 %v390, %v390
        %v479 = vmul.f32 %v393, %v393
        %v480 = vmul.f32 %v396, %v396
        %v481 = vmul.f32 %v399, %v399
        %v482 = vsel %vm401, %v466, 0.0
        %483 = vadd.xlane.f32.xlu0 %v482
        %v484 = vpop.xlane.xlu0 %483
        %v485 = vsel %vm401, %v467, 0.0
        %486 = vadd.xlane.f32.xlu0 %v485
        %v487 = vpop.xlane.xlu0 %486
        %v488 = vsel %vm401, %v468, 0.0
        %489 = vadd.xlane.f32.xlu0 %v488
        %v490 = vpop.xlane.xlu0 %489
        %v491 = vsel %vm401, %v469, 0.0
        %492 = vadd.xlane.f32.xlu0 %v491
        %v493 = vpop.xlane.xlu0 %492
        %v494 = vsel %vm401, %v470, 0.0
        %495 = vadd.xlane.f32.xlu0 %v494
        %v496 = vpop.xlane.xlu0 %495
        %v497 = vsel %vm401, %v471, 0.0
        %498 = vadd.xlane.f32.xlu0 %v497
        %v499 = vpop.xlane.xlu0 %498
        %v500 = vsel %vm401, %v472, 0.0
        %501 = vadd.xlane.f32.xlu0 %v500
        %v502 = vpop.xlane.xlu0 %501
        %v503 = vsel %vm401, %v473, 0.0
        %504 = vadd.xlane.f32.xlu0 %v503
        %v505 = vpop.xlane.xlu0 %504
        %v506 = vsel %vm401, %v474, 0.0
        %507 = vadd.xlane.f32.xlu0 %v506
        %v508 = vpop.xlane.xlu0 %507
        %v509 = vsel %vm401, %v475, 0.0
        %510 = vadd.xlane.f32.xlu0 %v509
        %v511 = vpop.xlane.xlu0 %510
        %v512 = vsel %vm401, %v476, 0.0
        %513 = vadd.xlane.f32.xlu0 %v512
        %v514 = vpop.xlane.xlu0 %513
        %v515 = vsel %vm401, %v477, 0.0
        %516 = vadd.xlane.f32.xlu0 %v515
        %v517 = vpop.xlane.xlu0 %516
        %v518 = vsel %vm401, %v478, 0.0
        %519 = vadd.xlane.f32.xlu0 %v518
        %v520 = vpop.xlane.xlu0 %519
        %v521 = vsel %vm401, %v479, 0.0
        %522 = vadd.xlane.f32.xlu0 %v521
        %v523 = vpop.xlane.xlu0 %522
        %v524 = vsel %vm401, %v480, 0.0
        %525 = vadd.xlane.f32.xlu0 %v524
        %v526 = vpop.xlane.xlu0 %525
        %v527 = vsel %vm401, %v481, 0.0
        %528 = vadd.xlane.f32.xlu0 %v527
        %v529 = vpop.xlane.xlu0 %528
        %v530 = vadd.f32 %v484, 0.0
        %v531 = vadd.f32 %v487, 0.0
        %v532 = vadd.f32 %v490, 0.0
        %v533 = vadd.f32 %v493, 0.0
        %v534 = vadd.f32 %v496, 0.0
        %v535 = vadd.f32 %v499, 0.0
        %v536 = vadd.f32 %v502, 0.0
        %v537 = vadd.f32 %v505, 0.0
        %v538 = vadd.f32 %v508, 0.0
        %v539 = vadd.f32 %v511, 0.0
        %v540 = vadd.f32 %v514, 0.0
        %v541 = vadd.f32 %v517, 0.0
        %v542 = vadd.f32 %v520, 0.0
        %v543 = vadd.f32 %v523, 0.0
        %v544 = vadd.f32 %v526, 0.0
        %v545 = vadd.f32 %v529, 0.0
        %s546 = scalar_lea.vmem %s214, 32
        %v547 = vld [vmem:[%s546] sm:$0xff]
        %v548 = vld [vmem:[%s546 + $0x8] sm:$0xff]
        %v549 = vld [vmem:[%s546 + $0x10] sm:$0xff]
        %v550 = vld [vmem:[%s546 + $0x18] sm:$0xff]
        %551 = vmatpush.msra.mxu0 0.0
        %552 = vmatpush.msra.mxu0 0.0
        %553 = vmatpush.msra.mxu0 0.0
        %554 = vmatpush.msra.mxu0 0.0
        %555 = vmatpush.msra.mxu0 0.0
        %556 = vmatpush.msra.mxu0 0.0
        %557 = vmatpush.msra.mxu0 0.0
        %558 = vmatpush.msra.mxu0 0.0
        %559 = vmatpush.msra.mxu0 0.0
        %560 = vmatpush.msra.mxu0 0.0
        %561 = vmatpush.msra.mxu0 0.0
        %562 = vmatpush.msra.mxu0 0.0
        %563 = vmatpush.msra.mxu0 %v550
        %564 = vmatpush.msra.mxu0 %v549
        %565 = vmatpush.msra.mxu0 %v548
        %566 = vmatpush.msra.mxu0 %v547
        %567 = vmatmul.f32.gmra.mxu0 %v289
        %v568 = vpop.f32.mrf.mxu0
        %v569 = vadd.f32 0.0, %v568
        %570 = vmatmul.f32.gmra.mxu0 %v292
        %v571 = vpop.f32.mrf.mxu0
        %v572 = vadd.f32 0.0, %v571
        %573 = vmatmul.f32.gmra.mxu0 %v295
        %v574 = vpop.f32.mrf.mxu0
        %v575 = vadd.f32 0.0, %v574
        %576 = vmatmul.f32.gmra.mxu0 %v298
        %v577 = vpop.f32.mrf.mxu0
        %v578 = vadd.f32 0.0, %v577
        %579 = vmatmul.f32.gmra.mxu0 %v301
        %v580 = vpop.f32.mrf.mxu0
        %v581 = vadd.f32 0.0, %v580
        %582 = vmatmul.f32.gmra.mxu0 %v304
        %v583 = vpop.f32.mrf.mxu0
        %v584 = vadd.f32 0.0, %v583
        %585 = vmatmul.f32.gmra.mxu0 %v307
        %v586 = vpop.f32.mrf.mxu0
        %v587 = vadd.f32 0.0, %v586
        %588 = vmatmul.f32.gmra.mxu0 %v310
        %v589 = vpop.f32.mrf.mxu0
        %v590 = vadd.f32 0.0, %v589
        %591 = vmatmul.f32.gmra.mxu0 %v313
        %v592 = vpop.f32.mrf.mxu0
        %v593 = vadd.f32 0.0, %v592
        %594 = vmatmul.f32.gmra.mxu0 %v316
        %v595 = vpop.f32.mrf.mxu0
        %v596 = vadd.f32 0.0, %v595
        %597 = vmatmul.f32.gmra.mxu0 %v319
        %v598 = vpop.f32.mrf.mxu0
        %v599 = vadd.f32 0.0, %v598
        %600 = vmatmul.f32.gmra.mxu0 %v322
        %v601 = vpop.f32.mrf.mxu0
        %v602 = vadd.f32 0.0, %v601
        %603 = vmatmul.f32.gmra.mxu0 %v325
        %v604 = vpop.f32.mrf.mxu0
        %v605 = vadd.f32 0.0, %v604
        %606 = vmatmul.f32.gmra.mxu0 %v328
        %v607 = vpop.f32.mrf.mxu0
        %v608 = vadd.f32 0.0, %v607
        %609 = vmatmul.f32.gmra.mxu0 %v331
        %v610 = vpop.f32.mrf.mxu0
        %v611 = vadd.f32 0.0, %v610
        %612 = vmatmul.f32.gmra.mxu0 %v334
        %v613 = vpop.f32.mrf.mxu0
        %v614 = vadd.f32 0.0, %v613
        %615 = vdwg.mxu0
        %v616 = vsel %vm401, %v569, 0.0
        %617 = vadd.xlane.f32.xlu0 %v616
        %v618 = vpop.xlane.xlu0 %617
        %v619 = vsel %vm401, %v572, 0.0
        %620 = vadd.xlane.f32.xlu0 %v619
        %v621 = vpop.xlane.xlu0 %620
        %v622 = vsel %vm401, %v575, 0.0
        %623 = vadd.xlane.f32.xlu0 %v622
        %v624 = vpop.xlane.xlu0 %623
        %v625 = vsel %vm401, %v578, 0.0
        %626 = vadd.xlane.f32.xlu0 %v625
        %v627 = vpop.xlane.xlu0 %626
        %v628 = vsel %vm401, %v581, 0.0
        %629 = vadd.xlane.f32.xlu0 %v628
        %v630 = vpop.xlane.xlu0 %629
        %v631 = vsel %vm401, %v584, 0.0
        %632 = vadd.xlane.f32.xlu0 %v631
        %v633 = vpop.xlane.xlu0 %632
        %v634 = vsel %vm401, %v587, 0.0
        %635 = vadd.xlane.f32.xlu0 %v634
        %v636 = vpop.xlane.xlu0 %635
        %v637 = vsel %vm401, %v590, 0.0
        %638 = vadd.xlane.f32.xlu0 %v637
        %v639 = vpop.xlane.xlu0 %638
        %v640 = vsel %vm401, %v593, 0.0
        %641 = vadd.xlane.f32.xlu0 %v640
        %v642 = vpop.xlane.xlu0 %641
        %v643 = vsel %vm401, %v596, 0.0
        %644 = vadd.xlane.f32.xlu0 %v643
        %v645 = vpop.xlane.xlu0 %644
        %v646 = vsel %vm401, %v599, 0.0
        %647 = vadd.xlane.f32.xlu0 %v646
        %v648 = vpop.xlane.xlu0 %647
        %v649 = vsel %vm401, %v602, 0.0
        %650 = vadd.xlane.f32.xlu0 %v649
        %v651 = vpop.xlane.xlu0 %650
        %v652 = vsel %vm401, %v605, 0.0
        %653 = vadd.xlane.f32.xlu0 %v652
        %v654 = vpop.xlane.xlu0 %653
        %v655 = vsel %vm401, %v608, 0.0
        %656 = vadd.xlane.f32.xlu0 %v655
        %v657 = vpop.xlane.xlu0 %656
        %v658 = vsel %vm401, %v611, 0.0
        %659 = vadd.xlane.f32.xlu0 %v658
        %v660 = vpop.xlane.xlu0 %659
        %v661 = vsel %vm401, %v614, 0.0
        %662 = vadd.xlane.f32.xlu0 %v661
        %v663 = vpop.xlane.xlu0 %662
        %v664 = vadd.f32 %v450, %v618
        %v665 = vadd.f32 %v451, %v621
        %v666 = vadd.f32 %v452, %v624
        %v667 = vadd.f32 %v453, %v627
        %v668 = vadd.f32 %v454, %v630
        %v669 = vadd.f32 %v455, %v633
        %v670 = vadd.f32 %v456, %v636
        %v671 = vadd.f32 %v457, %v639
        %v672 = vadd.f32 %v458, %v642
        %v673 = vadd.f32 %v459, %v645
        %v674 = vadd.f32 %v460, %v648
        %v675 = vadd.f32 %v461, %v651
        %v676 = vadd.f32 %v462, %v654
        %v677 = vadd.f32 %v463, %v657
        %v678 = vadd.f32 %v464, %v660
        %v679 = vadd.f32 %v465, %v663
        %v680 = vmul.f32 %v569, %v569
        %v681 = vmul.f32 %v572, %v572
        %v682 = vmul.f32 %v575, %v575
        %v683 = vmul.f32 %v578, %v578
        %v684 = vmul.f32 %v581, %v581
        %v685 = vmul.f32 %v584, %v584
        %v686 = vmul.f32 %v587, %v587
        %v687 = vmul.f32 %v590, %v590
        %v688 = vmul.f32 %v593, %v593
        %v689 = vmul.f32 %v596, %v596
        %v690 = vmul.f32 %v599, %v599
        %v691 = vmul.f32 %v602, %v602
        %v692 = vmul.f32 %v605, %v605
        %v693 = vmul.f32 %v608, %v608
        %v694 = vmul.f32 %v611, %v611
        %v695 = vmul.f32 %v614, %v614
        %v696 = vsel %vm401, %v680, 0.0
        %697 = vadd.xlane.f32.xlu0 %v696
        %v698 = vpop.xlane.xlu0 %697
        %v699 = vsel %vm401, %v681, 0.0
        %700 = vadd.xlane.f32.xlu0 %v699
        %v701 = vpop.xlane.xlu0 %700
        %v702 = vsel %vm401, %v682, 0.0
        %703 = vadd.xlane.f32.xlu0 %v702
        %v704 = vpop.xlane.xlu0 %703
        %v705 = vsel %vm401, %v683, 0.0
        %706 = vadd.xlane.f32.xlu0 %v705
        %v707 = vpop.xlane.xlu0 %706
        %v708 = vsel %vm401, %v684, 0.0
        %709 = vadd.xlane.f32.xlu0 %v708
        %v710 = vpop.xlane.xlu0 %709
        %v711 = vsel %vm401, %v685, 0.0
        %712 = vadd.xlane.f32.xlu0 %v711
        %v713 = vpop.xlane.xlu0 %712
        %v714 = vsel %vm401, %v686, 0.0
        %715 = vadd.xlane.f32.xlu0 %v714
        %v716 = vpop.xlane.xlu0 %715
        %v717 = vsel %vm401, %v687, 0.0
        %718 = vadd.xlane.f32.xlu0 %v717
        %v719 = vpop.xlane.xlu0 %718
        %v720 = vsel %vm401, %v688, 0.0
        %721 = vadd.xlane.f32.xlu0 %v720
        %v722 = vpop.xlane.xlu0 %721
        %v723 = vsel %vm401, %v689, 0.0
        %724 = vadd.xlane.f32.xlu0 %v723
        %v725 = vpop.xlane.xlu0 %724
        %v726 = vsel %vm401, %v690, 0.0
        %727 = vadd.xlane.f32.xlu0 %v726
        %v728 = vpop.xlane.xlu0 %727
        %v729 = vsel %vm401, %v691, 0.0
        %730 = vadd.xlane.f32.xlu0 %v729
        %v731 = vpop.xlane.xlu0 %730
        %v732 = vsel %vm401, %v692, 0.0
        %733 = vadd.xlane.f32.xlu0 %v732
        %v734 = vpop.xlane.xlu0 %733
        %v735 = vsel %vm401, %v693, 0.0
        %736 = vadd.xlane.f32.xlu0 %v735
        %v737 = vpop.xlane.xlu0 %736
        %v738 = vsel %vm401, %v694, 0.0
        %739 = vadd.xlane.f32.xlu0 %v738
        %v740 = vpop.xlane.xlu0 %739
        %v741 = vsel %vm401, %v695, 0.0
        %742 = vadd.xlane.f32.xlu0 %v741
        %v743 = vpop.xlane.xlu0 %742
        %v744 = vadd.f32 %v530, %v698
        %v745 = vadd.f32 %v531, %v701
        %v746 = vadd.f32 %v532, %v704
        %v747 = vadd.f32 %v533, %v707
        %v748 = vadd.f32 %v534, %v710
        %v749 = vadd.f32 %v535, %v713
        %v750 = vadd.f32 %v536, %v716
        %v751 = vadd.f32 %v537, %v719
        %v752 = vadd.f32 %v538, %v722
        %v753 = vadd.f32 %v539, %v725
        %v754 = vadd.f32 %v540, %v728
        %v755 = vadd.f32 %v541, %v731
        %v756 = vadd.f32 %v542, %v734
        %v757 = vadd.f32 %v543, %v737
        %v758 = vadd.f32 %v544, %v740
        %v759 = vadd.f32 %v545, %v743
        %v760 = vld [vmem:[#allocation2] sm:$0xff]
        %v761 = vld [vmem:[#allocation2 + $0x8] sm:$0xff]
        %v762 = vld [vmem:[#allocation2 + $0x10] sm:$0xff]
        %v763 = vld [vmem:[#allocation2 + $0x18] sm:$0xff]
        %v764 = vld [vmem:[#allocation2 + $0x20] sm:$0xff]
        %v765 = vld [vmem:[#allocation2 + $0x28] sm:$0xff]
        %v766 = vld [vmem:[#allocation2 + $0x30] sm:$0xff]
        %v767 = vld [vmem:[#allocation2 + $0x38] sm:$0xff]
        %v768 = vld [vmem:[#allocation2 + $0x40] sm:$0xff]
        %v769 = vld [vmem:[#allocation2 + $0x48] sm:$0xff]
        %v770 = vld [vmem:[#allocation2 + $0x50] sm:$0xff]
        %v771 = vld [vmem:[#allocation2 + $0x58] sm:$0xff]
        %v772 = vld [vmem:[#allocation2 + $0x60] sm:$0xff]
        %v773 = vld [vmem:[#allocation2 + $0x68] sm:$0xff]
        %v774 = vld [vmem:[#allocation2 + $0x70] sm:$0xff]
        %v775 = vld [vmem:[#allocation2 + $0x78] sm:$0xff]
        %v776 = vadd.f32 %v760, %v664
        %v777 = vadd.f32 %v761, %v665
        %v778 = vadd.f32 %v762, %v666
        %v779 = vadd.f32 %v763, %v667
        %v780 = vadd.f32 %v764, %v668
        %v781 = vadd.f32 %v765, %v669
        %v782 = vadd.f32 %v766, %v670
        %v783 = vadd.f32 %v767, %v671
        %v784 = vadd.f32 %v768, %v672
        %v785 = vadd.f32 %v769, %v673
        %v786 = vadd.f32 %v770, %v674
        %v787 = vadd.f32 %v771, %v675
        %v788 = vadd.f32 %v772, %v676
        %v789 = vadd.f32 %v773, %v677
        %v790 = vadd.f32 %v774, %v678
        %v791 = vadd.f32 %v775, %v679
        %vm792 = vcmask 7168
        %793 = vst.msk [vmem:[#allocation2] sm:$0xff] %vm792, %v776
        %794 = vst.msk [vmem:[#allocation2 + $0x8] sm:$0xff] %vm792, %v777
        %795 = vst.msk [vmem:[#allocation2 + $0x10] sm:$0xff] %vm792, %v778
        %796 = vst.msk [vmem:[#allocation2 + $0x18] sm:$0xff] %vm792, %v779
        %797 = vst.msk [vmem:[#allocation2 + $0x20] sm:$0xff] %vm792, %v780
        %798 = vst.msk [vmem:[#allocation2 + $0x28] sm:$0xff] %vm792, %v781
        %799 = vst.msk [vmem:[#allocation2 + $0x30] sm:$0xff] %vm792, %v782
        %800 = vst.msk [vmem:[#allocation2 + $0x38] sm:$0xff] %vm792, %v783
        %801 = vst.msk [vmem:[#allocation2 + $0x40] sm:$0xff] %vm792, %v784
        %802 = vst.msk [vmem:[#allocation2 + $0x48] sm:$0xff] %vm792, %v785
        %803 = vst.msk [vmem:[#allocation2 + $0x50] sm:$0xff] %vm792, %v786
        %804 = vst.msk [vmem:[#allocation2 + $0x58] sm:$0xff] %vm792, %v787
        %805 = vst.msk [vmem:[#allocation2 + $0x60] sm:$0xff] %vm792, %v788
        %806 = vst.msk [vmem:[#allocation2 + $0x68] sm:$0xff] %vm792, %v789
        %807 = vst.msk [vmem:[#allocation2 + $0x70] sm:$0xff] %vm792, %v790
        %808 = vst.msk [vmem:[#allocation2 + $0x78] sm:$0xff] %vm792, %v791
        %v809 = vld [vmem:[#allocation3] sm:$0xff]
        %v810 = vld [vmem:[#allocation3 + $0x8] sm:$0xff]
        %v811 = vld [vmem:[#allocation3 + $0x10] sm:$0xff]
        %v812 = vld [vmem:[#allocation3 + $0x18] sm:$0xff]
        %v813 = vld [vmem:[#allocation3 + $0x20] sm:$0xff]
        %v814 = vld [vmem:[#allocation3 + $0x28] sm:$0xff]
        %v815 = vld [vmem:[#allocation3 + $0x30] sm:$0xff]
        %v816 = vld [vmem:[#allocation3 + $0x38] sm:$0xff]
        %v817 = vld [vmem:[#allocation3 + $0x40] sm:$0xff]
        %v818 = vld [vmem:[#allocation3 + $0x48] sm:$0xff]
        %v819 = vld [vmem:[#allocation3 + $0x50] sm:$0xff]
        %v820 = vld [vmem:[#allocation3 + $0x58] sm:$0xff]
        %v821 = vld [vmem:[#allocation3 + $0x60] sm:$0xff]
        %v822 = vld [vmem:[#allocation3 + $0x68] sm:$0xff]
        %v823 = vld [vmem:[#allocation3 + $0x70] sm:$0xff]
        %v824 = vld [vmem:[#allocation3 + $0x78] sm:$0xff]
        %v825 = vadd.f32 %v809, %v744
        %v826 = vadd.f32 %v810, %v745
        %v827 = vadd.f32 %v811, %v746
        %v828 = vadd.f32 %v812, %v747
        %v829 = vadd.f32 %v813, %v748
        %v830 = vadd.f32 %v814, %v749
        %v831 = vadd.f32 %v815, %v750
        %v832 = vadd.f32 %v816, %v751
        %v833 = vadd.f32 %v817, %v752
        %v834 = vadd.f32 %v818, %v753
        %v835 = vadd.f32 %v819, %v754
        %v836 = vadd.f32 %v820, %v755
        %v837 = vadd.f32 %v821, %v756
        %v838 = vadd.f32 %v822, %v757
        %v839 = vadd.f32 %v823, %v758
        %v840 = vadd.f32 %v824, %v759
        %841 = vst.msk [vmem:[#allocation3] sm:$0xff] %vm792, %v825
        %842 = vst.msk [vmem:[#allocation3 + $0x8] sm:$0xff] %vm792, %v826
        %843 = vst.msk [vmem:[#allocation3 + $0x10] sm:$0xff] %vm792, %v827
        %844 = vst.msk [vmem:[#allocation3 + $0x18] sm:$0xff] %vm792, %v828
        %845 = vst.msk [vmem:[#allocation3 + $0x20] sm:$0xff] %vm792, %v829
        %846 = vst.msk [vmem:[#allocation3 + $0x28] sm:$0xff] %vm792, %v830
        %847 = vst.msk [vmem:[#allocation3 + $0x30] sm:$0xff] %vm792, %v831
        %848 = vst.msk [vmem:[#allocation3 + $0x38] sm:$0xff] %vm792, %v832
        %849 = vst.msk [vmem:[#allocation3 + $0x40] sm:$0xff] %vm792, %v833
        %850 = vst.msk [vmem:[#allocation3 + $0x48] sm:$0xff] %vm792, %v834
        %851 = vst.msk [vmem:[#allocation3 + $0x50] sm:$0xff] %vm792, %v835
        %852 = vst.msk [vmem:[#allocation3 + $0x58] sm:$0xff] %vm792, %v836
        %853 = vst.msk [vmem:[#allocation3 + $0x60] sm:$0xff] %vm792, %v837
        %854 = vst.msk [vmem:[#allocation3 + $0x68] sm:$0xff] %vm792, %v838
        %855 = vst.msk [vmem:[#allocation3 + $0x70] sm:$0xff] %vm792, %v839
        %856 = vst.msk [vmem:[#allocation3 + $0x78] sm:$0xff] %vm792, %v840
      $region44: #{tpu_custom_call.1} parent=35 // pred_fallthru
        _
      // Predicated region
      $region45: #{tpu_custom_call.1} parent=35 // pred_check
        _
      $region46: #{tpu_custom_call.1} parent=35 // pred_check_branch
        %858 = sbr.rel (%p227) target = $region48
      $region47: #{tpu_custom_call.1} parent=35 // pred_region
        %s859 = sld [smem:[#allocation7]]
        %s860 = scvt.s32.f32 %s859
        %v861 = vld [vmem:[#allocation2] sm:$0xff]
        %v862 = vld [vmem:[#allocation2 + $0x8] sm:$0xff]
        %v863 = vld [vmem:[#allocation2 + $0x10] sm:$0xff]
        %v864 = vld [vmem:[#allocation2 + $0x18] sm:$0xff]
        %v865 = vld [vmem:[#allocation2 + $0x20] sm:$0xff]
        %v866 = vld [vmem:[#allocation2 + $0x28] sm:$0xff]
        %v867 = vld [vmem:[#allocation2 + $0x30] sm:$0xff]
        %v868 = vld [vmem:[#allocation2 + $0x38] sm:$0xff]
        %v869 = vld [vmem:[#allocation2 + $0x40] sm:$0xff]
        %v870 = vld [vmem:[#allocation2 + $0x48] sm:$0xff]
        %v871 = vld [vmem:[#allocation2 + $0x50] sm:$0xff]
        %v872 = vld [vmem:[#allocation2 + $0x58] sm:$0xff]
        %v873 = vld [vmem:[#allocation2 + $0x60] sm:$0xff]
        %v874 = vld [vmem:[#allocation2 + $0x68] sm:$0xff]
        %v875 = vld [vmem:[#allocation2 + $0x70] sm:$0xff]
        %v876 = vld [vmem:[#allocation2 + $0x78] sm:$0xff]
        %v877 = vstv %s860
        %v878 = vrcp.pop %v877
        %v879 = vmul.f32 %v877, %v878
        %v880 = vsub.f32 1.0, %v879
        %v881 = vmul.f32 %v878, %v880
        %v882 = vadd.f32 %v878, %v881
        %vm883 = vweird.f32 %v877
        %vm884 = vweird.f32 %v878
        %vm885 = vmor %vm883, %vm884
        %v886 = vsel %vm885, %v878, %v882
        %v887 = vand.u32 2147483647, %v877
        %vm888 = vcmp.eq.f32.partialorder %v887, 8.507059e+37
        %v889 = vand.u32 %v877, 2147483648
        %v890 = vor.u32 1.1754944e-38, %v889
        %v891 = vsel %vm888, %v890, %v886
        %v892 = vmul.f32 %v861, %v891
        %v893 = vmul.f32 %v862, %v891
        %v894 = vmul.f32 %v863, %v891
        %v895 = vmul.f32 %v864, %v891
        %v896 = vmul.f32 %v865, %v891
        %v897 = vmul.f32 %v866, %v891
        %v898 = vmul.f32 %v867, %v891
        %v899 = vmul.f32 %v868, %v891
        %v900 = vmul.f32 %v869, %v891
        %v901 = vmul.f32 %v870, %v891
        %v902 = vmul.f32 %v871, %v891
        %v903 = vmul.f32 %v872, %v891
        %v904 = vmul.f32 %v873, %v891
        %v905 = vmul.f32 %v874, %v891
        %v906 = vmul.f32 %v875, %v891
        %v907 = vmul.f32 %v876, %v891
        %v908 = vld [vmem:[#allocation3] sm:$0xff]
        %v909 = vld [vmem:[#allocation3 + $0x8] sm:$0xff]
        %v910 = vld [vmem:[#allocation3 + $0x10] sm:$0xff]
        %v911 = vld [vmem:[#allocation3 + $0x18] sm:$0xff]
        %v912 = vld [vmem:[#allocation3 + $0x20] sm:$0xff]
        %v913 = vld [vmem:[#allocation3 + $0x28] sm:$0xff]
        %v914 = vld [vmem:[#allocation3 + $0x30] sm:$0xff]
        %v915 = vld [vmem:[#allocation3 + $0x38] sm:$0xff]
        %v916 = vld [vmem:[#allocation3 + $0x40] sm:$0xff]
        %v917 = vld [vmem:[#allocation3 + $0x48] sm:$0xff]
        %v918 = vld [vmem:[#allocation3 + $0x50] sm:$0xff]
        %v919 = vld [vmem:[#allocation3 + $0x58] sm:$0xff]
        %v920 = vld [vmem:[#allocation3 + $0x60] sm:$0xff]
        %v921 = vld [vmem:[#allocation3 + $0x68] sm:$0xff]
        %v922 = vld [vmem:[#allocation3 + $0x70] sm:$0xff]
        %v923 = vld [vmem:[#allocation3 + $0x78] sm:$0xff]
        %v924 = vmul.f32 %v908, %v891
        %v925 = vmul.f32 %v909, %v891
        %v926 = vmul.f32 %v910, %v891
        %v927 = vmul.f32 %v911, %v891
        %v928 = vmul.f32 %v912, %v891
        %v929 = vmul.f32 %v913, %v891
        %v930 = vmul.f32 %v914, %v891
        %v931 = vmul.f32 %v915, %v891
        %v932 = vmul.f32 %v916, %v891
        %v933 = vmul.f32 %v917, %v891
        %v934 = vmul.f32 %v918, %v891
        %v935 = vmul.f32 %v919, %v891
        %v936 = vmul.f32 %v920, %v891
        %v937 = vmul.f32 %v921, %v891
        %v938 = vmul.f32 %v922, %v891
        %v939 = vmul.f32 %v923, %v891
        %v940 = vmul.f32 %v892, %v892
        %v941 = vmul.f32 %v893, %v893
        %v942 = vmul.f32 %v894, %v894
        %v943 = vmul.f32 %v895, %v895
        %v944 = vmul.f32 %v896, %v896
        %v945 = vmul.f32 %v897, %v897
        %v946 = vmul.f32 %v898, %v898
        %v947 = vmul.f32 %v899, %v899
        %v948 = vmul.f32 %v900, %v900
        %v949 = vmul.f32 %v901, %v901
        %v950 = vmul.f32 %v902, %v902
        %v951 = vmul.f32 %v903, %v903
        %v952 = vmul.f32 %v904, %v904
        %v953 = vmul.f32 %v905, %v905
        %v954 = vmul.f32 %v906, %v906
        %v955 = vmul.f32 %v907, %v907
        %v956 = vsub.f32 %v924, %v940
        %v957 = vsub.f32 %v925, %v941
        %v958 = vsub.f32 %v926, %v942
        %v959 = vsub.f32 %v927, %v943
        %v960 = vsub.f32 %v928, %v944
        %v961 = vsub.f32 %v929, %v945
        %v962 = vsub.f32 %v930, %v946
        %v963 = vsub.f32 %v931, %v947
        %v964 = vsub.f32 %v932, %v948
        %v965 = vsub.f32 %v933, %v949
        %v966 = vsub.f32 %v934, %v950
        %v967 = vsub.f32 %v935, %v951
        %v968 = vsub.f32 %v936, %v952
        %v969 = vsub.f32 %v937, %v953
        %v970 = vsub.f32 %v938, %v954
        %v971 = vsub.f32 %v939, %v955
        %v972 = vadd.f32 %v956, 1e-05
        %v973 = vadd.f32 %v957, 1e-05
        %v974 = vadd.f32 %v958, 1e-05
        %v975 = vadd.f32 %v959, 1e-05
        %v976 = vadd.f32 %v960, 1e-05
        %v977 = vadd.f32 %v961, 1e-05
        %v978 = vadd.f32 %v962, 1e-05
        %v979 = vadd.f32 %v963, 1e-05
        %v980 = vadd.f32 %v964, 1e-05
        %v981 = vadd.f32 %v965, 1e-05
        %v982 = vadd.f32 %v966, 1e-05
        %v983 = vadd.f32 %v967, 1e-05
        %v984 = vadd.f32 %v968, 1e-05
        %v985 = vadd.f32 %v969, 1e-05
        %v986 = vadd.f32 %v970, 1e-05
        %v987 = vadd.f32 %v971, 1e-05
        %v988 = vrsqrt.pop %v972
        %v989 = vmul.f32 %v988, %v972
        %v990 = vmul.f32 %v989, %v988
        %v991 = vmul.f32 0.5, %v990
        %v992 = vsub.f32 1.5, %v991
        %v993 = vmul.f32 %v988, %v992
        %vm994 = vweird.f32 %v972
        %vm995 = vweird.f32 %v988
        %vm996 = vmor %vm994, %vm995
        %v997 = vsel %vm996, %v988, %v993
        %v998 = vrsqrt.pop %v973
        %v999 = vmul.f32 %v998, %v973
        %v1000 = vmul.f32 %v999, %v998
        %v1001 = vmul.f32 0.5, %v1000
        %v1002 = vsub.f32 1.5, %v1001
        %v1003 = vmul.f32 %v998, %v1002
        %vm1004 = vweird.f32 %v973
        %vm1005 = vweird.f32 %v998
        %vm1006 = vmor %vm1004, %vm1005
        %v1007 = vsel %vm1006, %v998, %v1003
        %v1008 = vrsqrt.pop %v974
        %v1009 = vmul.f32 %v1008, %v974
        %v1010 = vmul.f32 %v1009, %v1008
        %v1011 = vmul.f32 0.5, %v1010
        %v1012 = vsub.f32 1.5, %v1011
        %v1013 = vmul.f32 %v1008, %v1012
        %vm1014 = vweird.f32 %v974
        %vm1015 = vweird.f32 %v1008
        %vm1016 = vmor %vm1014, %vm1015
        %v1017 = vsel %vm1016, %v1008, %v1013
        %v1018 = vrsqrt.pop %v975
        %v1019 = vmul.f32 %v1018, %v975
        %v1020 = vmul.f32 %v1019, %v1018
        %v1021 = vmul.f32 0.5, %v1020
        %v1022 = vsub.f32 1.5, %v1021
        %v1023 = vmul.f32 %v1018, %v1022
        %vm1024 = vweird.f32 %v975
        %vm1025 = vweird.f32 %v1018
        %vm1026 = vmor %vm1024, %vm1025
        %v1027 = vsel %vm1026, %v1018, %v1023
        %v1028 = vrsqrt.pop %v976
        %v1029 = vmul.f32 %v1028, %v976
        %v1030 = vmul.f32 %v1029, %v1028
        %v1031 = vmul.f32 0.5, %v1030
        %v1032 = vsub.f32 1.5, %v1031
        %v1033 = vmul.f32 %v1028, %v1032
        %vm1034 = vweird.f32 %v976
        %vm1035 = vweird.f32 %v1028
        %vm1036 = vmor %vm1034, %vm1035
        %v1037 = vsel %vm1036, %v1028, %v1033
        %v1038 = vrsqrt.pop %v977
        %v1039 = vmul.f32 %v1038, %v977
        %v1040 = vmul.f32 %v1039, %v1038
        %v1041 = vmul.f32 0.5, %v1040
        %v1042 = vsub.f32 1.5, %v1041
        %v1043 = vmul.f32 %v1038, %v1042
        %vm1044 = vweird.f32 %v977
        %vm1045 = vweird.f32 %v1038
        %vm1046 = vmor %vm1044, %vm1045
        %v1047 = vsel %vm1046, %v1038, %v1043
        %v1048 = vrsqrt.pop %v978
        %v1049 = vmul.f32 %v1048, %v978
        %v1050 = vmul.f32 %v1049, %v1048
        %v1051 = vmul.f32 0.5, %v1050
        %v1052 = vsub.f32 1.5, %v1051
        %v1053 = vmul.f32 %v1048, %v1052
        %vm1054 = vweird.f32 %v978
        %vm1055 = vweird.f32 %v1048
        %vm1056 = vmor %vm1054, %vm1055
        %v1057 = vsel %vm1056, %v1048, %v1053
        %v1058 = vrsqrt.pop %v979
        %v1059 = vmul.f32 %v1058, %v979
        %v1060 = vmul.f32 %v1059, %v1058
        %v1061 = vmul.f32 0.5, %v1060
        %v1062 = vsub.f32 1.5, %v1061
        %v1063 = vmul.f32 %v1058, %v1062
        %vm1064 = vweird.f32 %v979
        %vm1065 = vweird.f32 %v1058
        %vm1066 = vmor %vm1064, %vm1065
        %v1067 = vsel %vm1066, %v1058, %v1063
        %v1068 = vrsqrt.pop %v980
        %v1069 = vmul.f32 %v1068, %v980
        %v1070 = vmul.f32 %v1069, %v1068
        %v1071 = vmul.f32 0.5, %v1070
        %v1072 = vsub.f32 1.5, %v1071
        %v1073 = vmul.f32 %v1068, %v1072
        %vm1074 = vweird.f32 %v980
        %vm1075 = vweird.f32 %v1068
        %vm1076 = vmor %vm1074, %vm1075
        %v1077 = vsel %vm1076, %v1068, %v1073
        %v1078 = vrsqrt.pop %v981
        %v1079 = vmul.f32 %v1078, %v981
        %v1080 = vmul.f32 %v1079, %v1078
        %v1081 = vmul.f32 0.5, %v1080
        %v1082 = vsub.f32 1.5, %v1081
        %v1083 = vmul.f32 %v1078, %v1082
        %vm1084 = vweird.f32 %v981
        %vm1085 = vweird.f32 %v1078
        %vm1086 = vmor %vm1084, %vm1085
        %v1087 = vsel %vm1086, %v1078, %v1083
        %v1088 = vrsqrt.pop %v982
        %v1089 = vmul.f32 %v1088, %v982
        %v1090 = vmul.f32 %v1089, %v1088
        %v1091 = vmul.f32 0.5, %v1090
        %v1092 = vsub.f32 1.5, %v1091
        %v1093 = vmul.f32 %v1088, %v1092
        %vm1094 = vweird.f32 %v982
        %vm1095 = vweird.f32 %v1088
        %vm1096 = vmor %vm1094, %vm1095
        %v1097 = vsel %vm1096, %v1088, %v1093
        %v1098 = vrsqrt.pop %v983
        %v1099 = vmul.f32 %v1098, %v983
        %v1100 = vmul.f32 %v1099, %v1098
        %v1101 = vmul.f32 0.5, %v1100
        %v1102 = vsub.f32 1.5, %v1101
        %v1103 = vmul.f32 %v1098, %v1102
        %vm1104 = vweird.f32 %v983
        %vm1105 = vweird.f32 %v1098
        %vm1106 = vmor %vm1104, %vm1105
        %v1107 = vsel %vm1106, %v1098, %v1103
        %v1108 = vrsqrt.pop %v984
        %v1109 = vmul.f32 %v1108, %v984
        %v1110 = vmul.f32 %v1109, %v1108
        %v1111 = vmul.f32 0.5, %v1110
        %v1112 = vsub.f32 1.5, %v1111
        %v1113 = vmul.f32 %v1108, %v1112
        %vm1114 = vweird.f32 %v984
        %vm1115 = vweird.f32 %v1108
        %vm1116 = vmor %vm1114, %vm1115
        %v1117 = vsel %vm1116, %v1108, %v1113
        %v1118 = vrsqrt.pop %v985
        %v1119 = vmul.f32 %v1118, %v985
        %v1120 = vmul.f32 %v1119, %v1118
        %v1121 = vmul.f32 0.5, %v1120
        %v1122 = vsub.f32 1.5, %v1121
        %v1123 = vmul.f32 %v1118, %v1122
        %vm1124 = vweird.f32 %v985
        %vm1125 = vweird.f32 %v1118
        %vm1126 = vmor %vm1124, %vm1125
        %v1127 = vsel %vm1126, %v1118, %v1123
        %v1128 = vrsqrt.pop %v986
        %v1129 = vmul.f32 %v1128, %v986
        %v1130 = vmul.f32 %v1129, %v1128
        %v1131 = vmul.f32 0.5, %v1130
        %v1132 = vsub.f32 1.5, %v1131
        %v1133 = vmul.f32 %v1128, %v1132
        %vm1134 = vweird.f32 %v986
        %vm1135 = vweird.f32 %v1128
        %vm1136 = vmor %vm1134, %vm1135
        %v1137 = vsel %vm1136, %v1128, %v1133
        %v1138 = vrsqrt.pop %v987
        %v1139 = vmul.f32 %v1138, %v987
        %v1140 = vmul.f32 %v1139, %v1138
        %v1141 = vmul.f32 0.5, %v1140
        %v1142 = vsub.f32 1.5, %v1141
        %v1143 = vmul.f32 %v1138, %v1142
        %vm1144 = vweird.f32 %v987
        %vm1145 = vweird.f32 %v1138
        %vm1146 = vmor %vm1144, %vm1145
        %v1147 = vsel %vm1146, %v1138, %v1143
        %v1148 = vld [vmem:[%s3] sm:$0xff]
        %v1149 = vld [vmem:[%s3 + $0x8] sm:$0xff]
        %v1150 = vld [vmem:[%s3 + $0x10] sm:$0xff]
        %v1151 = vld [vmem:[%s3 + $0x18] sm:$0xff]
        %v1152 = vld [vmem:[%s3 + $0x20] sm:$0xff]
        %v1153 = vld [vmem:[%s3 + $0x28] sm:$0xff]
        %v1154 = vld [vmem:[%s3 + $0x30] sm:$0xff]
        %v1155 = vld [vmem:[%s3 + $0x38] sm:$0xff]
        %v1156 = vld [vmem:[%s3 + $0x40] sm:$0xff]
        %v1157 = vld [vmem:[%s3 + $0x48] sm:$0xff]
        %v1158 = vld [vmem:[%s3 + $0x50] sm:$0xff]
        %v1159 = vld [vmem:[%s3 + $0x58] sm:$0xff]
        %v1160 = vld [vmem:[%s3 + $0x60] sm:$0xff]
        %v1161 = vld [vmem:[%s3 + $0x68] sm:$0xff]
        %v1162 = vld [vmem:[%s3 + $0x70] sm:$0xff]
        %v1163 = vld [vmem:[%s3 + $0x78] sm:$0xff]
        %v1164 = vmul.f32 %v1148, %v997
        %v1165 = vmul.f32 %v1149, %v1007
        %v1166 = vmul.f32 %v1150, %v1017
        %v1167 = vmul.f32 %v1151, %v1027
        %v1168 = vmul.f32 %v1152, %v1037
        %v1169 = vmul.f32 %v1153, %v1047
        %v1170 = vmul.f32 %v1154, %v1057
        %v1171 = vmul.f32 %v1155, %v1067
        %v1172 = vmul.f32 %v1156, %v1077
        %v1173 = vmul.f32 %v1157, %v1087
        %v1174 = vmul.f32 %v1158, %v1097
        %v1175 = vmul.f32 %v1159, %v1107
        %v1176 = vmul.f32 %v1160, %v1117
        %v1177 = vmul.f32 %v1161, %v1127
        %v1178 = vmul.f32 %v1162, %v1137
        %v1179 = vmul.f32 %v1163, %v1147
        %vm1180 = vcmask 7168
        %1181 = vst.msk [vmem:[#allocation4] sm:$0xff] %vm1180, %v1164
        %1182 = vst.msk [vmem:[#allocation4 + $0x8] sm:$0xff] %vm1180, %v1165
        %1183 = vst.msk [vmem:[#allocation4 + $0x10] sm:$0xff] %vm1180, %v1166
        %1184 = vst.msk [vmem:[#allocation4 + $0x18] sm:$0xff] %vm1180, %v1167
        %1185 = vst.msk [vmem:[#allocation4 + $0x20] sm:$0xff] %vm1180, %v1168
        %1186 = vst.msk [vmem:[#allocation4 + $0x28] sm:$0xff] %vm1180, %v1169
        %1187 = vst.msk [vmem:[#allocation4 + $0x30] sm:$0xff] %vm1180, %v1170
        %1188 = vst.msk [vmem:[#allocation4 + $0x38] sm:$0xff] %vm1180, %v1171
        %1189 = vst.msk [vmem:[#allocation4 + $0x40] sm:$0xff] %vm1180, %v1172
        %1190 = vst.msk [vmem:[#allocation4 + $0x48] sm:$0xff] %vm1180, %v1173
        %1191 = vst.msk [vmem:[#allocation4 + $0x50] sm:$0xff] %vm1180, %v1174
        %1192 = vst.msk [vmem:[#allocation4 + $0x58] sm:$0xff] %vm1180, %v1175
        %1193 = vst.msk [vmem:[#allocation4 + $0x60] sm:$0xff] %vm1180, %v1176
        %1194 = vst.msk [vmem:[#allocation4 + $0x68] sm:$0xff] %vm1180, %v1177
        %1195 = vst.msk [vmem:[#allocation4 + $0x70] sm:$0xff] %vm1180, %v1178
        %1196 = vst.msk [vmem:[#allocation4 + $0x78] sm:$0xff] %vm1180, %v1179
        %v1197 = vld [vmem:[%s4] sm:$0xff]
        %v1198 = vld [vmem:[%s4 + $0x8] sm:$0xff]
        %v1199 = vld [vmem:[%s4 + $0x10] sm:$0xff]
        %v1200 = vld [vmem:[%s4 + $0x18] sm:$0xff]
        %v1201 = vld [vmem:[%s4 + $0x20] sm:$0xff]
        %v1202 = vld [vmem:[%s4 + $0x28] sm:$0xff]
        %v1203 = vld [vmem:[%s4 + $0x30] sm:$0xff]
        %v1204 = vld [vmem:[%s4 + $0x38] sm:$0xff]
        %v1205 = vld [vmem:[%s4 + $0x40] sm:$0xff]
        %v1206 = vld [vmem:[%s4 + $0x48] sm:$0xff]
        %v1207 = vld [vmem:[%s4 + $0x50] sm:$0xff]
        %v1208 = vld [vmem:[%s4 + $0x58] sm:$0xff]
        %v1209 = vld [vmem:[%s4 + $0x60] sm:$0xff]
        %v1210 = vld [vmem:[%s4 + $0x68] sm:$0xff]
        %v1211 = vld [vmem:[%s4 + $0x70] sm:$0xff]
        %v1212 = vld [vmem:[%s4 + $0x78] sm:$0xff]
        %v1213 = vmul.f32 %v1164, %v892
        %v1214 = vmul.f32 %v1165, %v893
        %v1215 = vmul.f32 %v1166, %v894
        %v1216 = vmul.f32 %v1167, %v895
        %v1217 = vmul.f32 %v1168, %v896
        %v1218 = vmul.f32 %v1169, %v897
        %v1219 = vmul.f32 %v1170, %v898
        %v1220 = vmul.f32 %v1171, %v899
        %v1221 = vmul.f32 %v1172, %v900
        %v1222 = vmul.f32 %v1173, %v901
        %v1223 = vmul.f32 %v1174, %v902
        %v1224 = vmul.f32 %v1175, %v903
        %v1225 = vmul.f32 %v1176, %v904
        %v1226 = vmul.f32 %v1177, %v905
        %v1227 = vmul.f32 %v1178, %v906
        %v1228 = vmul.f32 %v1179, %v907
        %v1229 = vsub.f32 %v1197, %v1213
        %v1230 = vsub.f32 %v1198, %v1214
        %v1231 = vsub.f32 %v1199, %v1215
        %v1232 = vsub.f32 %v1200, %v1216
        %v1233 = vsub.f32 %v1201, %v1217
        %v1234 = vsub.f32 %v1202, %v1218
        %v1235 = vsub.f32 %v1203, %v1219
        %v1236 = vsub.f32 %v1204, %v1220
        %v1237 = vsub.f32 %v1205, %v1221
        %v1238 = vsub.f32 %v1206, %v1222
        %v1239 = vsub.f32 %v1207, %v1223
        %v1240 = vsub.f32 %v1208, %v1224
        %v1241 = vsub.f32 %v1209, %v1225
        %v1242 = vsub.f32 %v1210, %v1226
        %v1243 = vsub.f32 %v1211, %v1227
        %v1244 = vsub.f32 %v1212, %v1228
        %1245 = vst.msk [vmem:[#allocation5] sm:$0xff] %vm1180, %v1229
        %1246 = vst.msk [vmem:[#allocation5 + $0x8] sm:$0xff] %vm1180, %v1230
        %1247 = vst.msk [vmem:[#allocation5 + $0x10] sm:$0xff] %vm1180, %v1231
        %1248 = vst.msk [vmem:[#allocation5 + $0x18] sm:$0xff] %vm1180, %v1232
        %1249 = vst.msk [vmem:[#allocation5 + $0x20] sm:$0xff] %vm1180, %v1233
        %1250 = vst.msk [vmem:[#allocation5 + $0x28] sm:$0xff] %vm1180, %v1234
        %1251 = vst.msk [vmem:[#allocation5 + $0x30] sm:$0xff] %vm1180, %v1235
        %1252 = vst.msk [vmem:[#allocation5 + $0x38] sm:$0xff] %vm1180, %v1236
        %1253 = vst.msk [vmem:[#allocation5 + $0x40] sm:$0xff] %vm1180, %v1237
        %1254 = vst.msk [vmem:[#allocation5 + $0x48] sm:$0xff] %vm1180, %v1238
        %1255 = vst.msk [vmem:[#allocation5 + $0x50] sm:$0xff] %vm1180, %v1239
        %1256 = vst.msk [vmem:[#allocation5 + $0x58] sm:$0xff] %vm1180, %v1240
        %1257 = vst.msk [vmem:[#allocation5 + $0x60] sm:$0xff] %vm1180, %v1241
        %1258 = vst.msk [vmem:[#allocation5 + $0x68] sm:$0xff] %vm1180, %v1242
        %1259 = vst.msk [vmem:[#allocation5 + $0x70] sm:$0xff] %vm1180, %v1243
        %1260 = vst.msk [vmem:[#allocation5 + $0x78] sm:$0xff] %vm1180, %v1244
      $region48: #{tpu_custom_call.1} parent=35 // pred_fallthru
        _
      %p1261 = scmp.eq.s32.totalorder %s21, 1
      // Predicated region
      $region49: #{tpu_custom_call.1} parent=35 // pred_check
        %p1262 = pneg %p1261
      $region50: #{tpu_custom_call.1} parent=35 // pred_check_branch
        %1264 = sbr.rel (%p1262) target = $region52
      $region51: #{tpu_custom_call.1} parent=35 // pred_region
        %v1265 = vld [vmem:[#allocation4] sm:$0xff]
        %v1266 = vld [vmem:[#allocation4 + $0x8] sm:$0xff]
        %v1267 = vld [vmem:[#allocation4 + $0x10] sm:$0xff]
        %v1268 = vld [vmem:[#allocation4 + $0x18] sm:$0xff]
        %v1269 = vld [vmem:[#allocation4 + $0x20] sm:$0xff]
        %v1270 = vld [vmem:[#allocation4 + $0x28] sm:$0xff]
        %v1271 = vld [vmem:[#allocation4 + $0x30] sm:$0xff]
        %v1272 = vld [vmem:[#allocation4 + $0x38] sm:$0xff]
        %v1273 = vld [vmem:[#allocation4 + $0x40] sm:$0xff]
        %v1274 = vld [vmem:[#allocation4 + $0x48] sm:$0xff]
        %v1275 = vld [vmem:[#allocation4 + $0x50] sm:$0xff]
        %v1276 = vld [vmem:[#allocation4 + $0x58] sm:$0xff]
        %v1277 = vld [vmem:[#allocation4 + $0x60] sm:$0xff]
        %v1278 = vld [vmem:[#allocation4 + $0x68] sm:$0xff]
        %v1279 = vld [vmem:[#allocation4 + $0x70] sm:$0xff]
        %v1280 = vld [vmem:[#allocation4 + $0x78] sm:$0xff]
        %v1281 = vld [vmem:[#allocation5] sm:$0xff]
        %v1282 = vld [vmem:[#allocation5 + $0x8] sm:$0xff]
        %v1283 = vld [vmem:[#allocation5 + $0x10] sm:$0xff]
        %v1284 = vld [vmem:[#allocation5 + $0x18] sm:$0xff]
        %v1285 = vld [vmem:[#allocation5 + $0x20] sm:$0xff]
        %v1286 = vld [vmem:[#allocation5 + $0x28] sm:$0xff]
        %v1287 = vld [vmem:[#allocation5 + $0x30] sm:$0xff]
        %v1288 = vld [vmem:[#allocation5 + $0x38] sm:$0xff]
        %v1289 = vld [vmem:[#allocation5 + $0x40] sm:$0xff]
        %v1290 = vld [vmem:[#allocation5 + $0x48] sm:$0xff]
        %v1291 = vld [vmem:[#allocation5 + $0x50] sm:$0xff]
        %v1292 = vld [vmem:[#allocation5 + $0x58] sm:$0xff]
        %v1293 = vld [vmem:[#allocation5 + $0x60] sm:$0xff]
        %v1294 = vld [vmem:[#allocation5 + $0x68] sm:$0xff]
        %v1295 = vld [vmem:[#allocation5 + $0x70] sm:$0xff]
        %v1296 = vld [vmem:[#allocation5 + $0x78] sm:$0xff]
        %v1297 = vld [vmem:[%s214] sm:$0xff]
        %v1298 = vld [vmem:[%s214 + $0x8] sm:$0xff]
        %v1299 = vld [vmem:[%s214 + $0x10] sm:$0xff]
        %v1300 = vld [vmem:[%s214 + $0x18] sm:$0xff]
        %vm1301 = vcmask 261120
        %v1303 = vsel %vm1301, %v264, 0
        %v1306 = vsel %vm1301, %v265, 0
        %v1309 = vsel %vm1301, %v266, 0
        %v1312 = vsel %vm1301, %v267, 0
        %v1315 = vsel %vm1301, %v268, 0
        %v1318 = vsel %vm1301, %v269, 0
        %v1321 = vsel %vm1301, %v270, 0
        %v1324 = vsel %vm1301, %v271, 0
        %v1327 = vsel %vm1301, %v272, 0
        %v1330 = vsel %vm1301, %v273, 0
        %v1333 = vsel %vm1301, %v274, 0
        %v1336 = vsel %vm1301, %v275, 0
        %v1339 = vsel %vm1301, %v276, 0
        %v1342 = vsel %vm1301, %v277, 0
        %v1345 = vsel %vm1301, %v278, 0
        %v1348 = vsel %vm1301, %v279, 0
        %1350 = vmatpush.msra.mxu0 0.0
        %1351 = vmatpush.msra.mxu0 0.0
        %1352 = vmatpush.msra.mxu0 0.0
        %1353 = vmatpush.msra.mxu0 0.0
        %1354 = vmatpush.msra.mxu0 0.0
        %1355 = vmatpush.msra.mxu0 0.0
        %1356 = vmatpush.msra.mxu0 0.0
        %1357 = vmatpush.msra.mxu0 0.0
        %1358 = vmatpush.msra.mxu0 0.0
        %1359 = vmatpush.msra.mxu0 0.0
        %1360 = vmatpush.msra.mxu0 0.0
        %1361 = vmatpush.msra.mxu0 0.0
        %1362 = vmatpush.msra.mxu0 %v1300
        %1363 = vmatpush.msra.mxu0 %v1299
        %1364 = vmatpush.msra.mxu0 %v1298
        %1365 = vmatpush.msra.mxu0 %v1297
        %1366 = vmatmul.f32.gmra.mxu0 %v1303
        %v1367 = vpop.f32.mrf.mxu0
        %v1368 = vadd.f32 0.0, %v1367
        %1369 = vmatmul.f32.gmra.mxu0 %v1306
        %v1370 = vpop.f32.mrf.mxu0
        %v1371 = vadd.f32 0.0, %v1370
        %1372 = vmatmul.f32.gmra.mxu0 %v1309
        %v1373 = vpop.f32.mrf.mxu0
        %v1374 = vadd.f32 0.0, %v1373
        %1375 = vmatmul.f32.gmra.mxu0 %v1312
        %v1376 = vpop.f32.mrf.mxu0
        %v1377 = vadd.f32 0.0, %v1376
        %1378 = vmatmul.f32.gmra.mxu0 %v1315
        %v1379 = vpop.f32.mrf.mxu0
        %v1380 = vadd.f32 0.0, %v1379
        %1381 = vmatmul.f32.gmra.mxu0 %v1318
        %v1382 = vpop.f32.mrf.mxu0
        %v1383 = vadd.f32 0.0, %v1382
        %1384 = vmatmul.f32.gmra.mxu0 %v1321
        %v1385 = vpop.f32.mrf.mxu0
        %v1386 = vadd.f32 0.0, %v1385
        %1387 = vmatmul.f32.gmra.mxu0 %v1324
        %v1388 = vpop.f32.mrf.mxu0
        %v1389 = vadd.f32 0.0, %v1388
        %1390 = vmatmul.f32.gmra.mxu0 %v1327
        %v1391 = vpop.f32.mrf.mxu0
        %v1392 = vadd.f32 0.0, %v1391
        %1393 = vmatmul.f32.gmra.mxu0 %v1330
        %v1394 = vpop.f32.mrf.mxu0
        %v1395 = vadd.f32 0.0, %v1394
        %1396 = vmatmul.f32.gmra.mxu0 %v1333
        %v1397 = vpop.f32.mrf.mxu0
        %v1398 = vadd.f32 0.0, %v1397
        %1399 = vmatmul.f32.gmra.mxu0 %v1336
        %v1400 = vpop.f32.mrf.mxu0
        %v1401 = vadd.f32 0.0, %v1400
        %1402 = vmatmul.f32.gmra.mxu0 %v1339
        %v1403 = vpop.f32.mrf.mxu0
        %v1404 = vadd.f32 0.0, %v1403
        %1405 = vmatmul.f32.gmra.mxu0 %v1342
        %v1406 = vpop.f32.mrf.mxu0
        %v1407 = vadd.f32 0.0, %v1406
        %1408 = vmatmul.f32.gmra.mxu0 %v1345
        %v1409 = vpop.f32.mrf.mxu0
        %v1410 = vadd.f32 0.0, %v1409
        %1411 = vmatmul.f32.gmra.mxu0 %v1348
        %v1412 = vpop.f32.mrf.mxu0
        %v1413 = vadd.f32 0.0, %v1412
        %1414 = vdwg.mxu0
        %1416 = vset.pattern.permute.xlu0 0
        %1417 = vperm.xlu0 %1416, %v1265
        %v1418 = vpop.permute.xlu0 %1417
        %1421 = vset.pattern.permute.xlu0 0
        %1422 = vperm.xlu0 %1421, %v1266
        %v1423 = vpop.permute.xlu0 %1422
        %1426 = vset.pattern.permute.xlu0 0
        %1427 = vperm.xlu0 %1426, %v1267
        %v1428 = vpop.permute.xlu0 %1427
        %1431 = vset.pattern.permute.xlu0 0
        %1432 = vperm.xlu0 %1431, %v1268
        %v1433 = vpop.permute.xlu0 %1432
        %1436 = vset.pattern.permute.xlu0 0
        %1437 = vperm.xlu0 %1436, %v1269
        %v1438 = vpop.permute.xlu0 %1437
        %1441 = vset.pattern.permute.xlu0 0
        %1442 = vperm.xlu0 %1441, %v1270
        %v1443 = vpop.permute.xlu0 %1442
        %1446 = vset.pattern.permute.xlu0 0
        %1447 = vperm.xlu0 %1446, %v1271
        %v1448 = vpop.permute.xlu0 %1447
        %1451 = vset.pattern.permute.xlu0 0
        %1452 = vperm.xlu0 %1451, %v1272
        %v1453 = vpop.permute.xlu0 %1452
        %1456 = vset.pattern.permute.xlu0 0
        %1457 = vperm.xlu0 %1456, %v1273
        %v1458 = vpop.permute.xlu0 %1457
        %1461 = vset.pattern.permute.xlu0 0
        %1462 = vperm.xlu0 %1461, %v1274
        %v1463 = vpop.permute.xlu0 %1462
        %1466 = vset.pattern.permute.xlu0 0
        %1467 = vperm.xlu0 %1466, %v1275
        %v1468 = vpop.permute.xlu0 %1467
        %1471 = vset.pattern.permute.xlu0 0
        %1472 = vperm.xlu0 %1471, %v1276
        %v1473 = vpop.permute.xlu0 %1472
        %1476 = vset.pattern.permute.xlu0 0
        %1477 = vperm.xlu0 %1476, %v1277
        %v1478 = vpop.permute.xlu0 %1477
        %1481 = vset.pattern.permute.xlu0 0
        %1482 = vperm.xlu0 %1481, %v1278
        %v1483 = vpop.permute.xlu0 %1482
        %1486 = vset.pattern.permute.xlu0 0
        %1487 = vperm.xlu0 %1486, %v1279
        %v1488 = vpop.permute.xlu0 %1487
        %1491 = vset.pattern.permute.xlu0 0
        %1492 = vperm.xlu0 %1491, %v1280
        %v1493 = vpop.permute.xlu0 %1492
        %v1495 = vmul.f32 %v1368, %v1418
        %v1496 = vmul.f32 %v1371, %v1423
        %v1497 = vmul.f32 %v1374, %v1428
        %v1498 = vmul.f32 %v1377, %v1433
        %v1499 = vmul.f32 %v1380, %v1438
        %v1500 = vmul.f32 %v1383, %v1443
        %v1501 = vmul.f32 %v1386, %v1448
        %v1502 = vmul.f32 %v1389, %v1453
        %v1503 = vmul.f32 %v1392, %v1458
        %v1504 = vmul.f32 %v1395, %v1463
        %v1505 = vmul.f32 %v1398, %v1468
        %v1506 = vmul.f32 %v1401, %v1473
        %v1507 = vmul.f32 %v1404, %v1478
        %v1508 = vmul.f32 %v1407, %v1483
        %v1509 = vmul.f32 %v1410, %v1488
        %v1510 = vmul.f32 %v1413, %v1493
        %1512 = vset.pattern.permute.xlu0 0
        %1513 = vperm.xlu0 %1512, %v1281
        %v1514 = vpop.permute.xlu0 %1513
        %1517 = vset.pattern.permute.xlu0 0
        %1518 = vperm.xlu0 %1517, %v1282
        %v1519 = vpop.permute.xlu0 %1518
        %1522 = vset.pattern.permute.xlu0 0
        %1523 = vperm.xlu0 %1522, %v1283
        %v1524 = vpop.permute.xlu0 %1523
        %1527 = vset.pattern.permute.xlu0 0
        %1528 = vperm.xlu0 %1527, %v1284
        %v1529 = vpop.permute.xlu0 %1528
        %1532 = vset.pattern.permute.xlu0 0
        %1533 = vperm.xlu0 %1532, %v1285
        %v1534 = vpop.permute.xlu0 %1533
        %1537 = vset.pattern.permute.xlu0 0
        %1538 = vperm.xlu0 %1537, %v1286
        %v1539 = vpop.permute.xlu0 %1538
        %1542 = vset.pattern.permute.xlu0 0
        %1543 = vperm.xlu0 %1542, %v1287
        %v1544 = vpop.permute.xlu0 %1543
        %1547 = vset.pattern.permute.xlu0 0
        %1548 = vperm.xlu0 %1547, %v1288
        %v1549 = vpop.permute.xlu0 %1548
        %1552 = vset.pattern.permute.xlu0 0
        %1553 = vperm.xlu0 %1552, %v1289
        %v1554 = vpop.permute.xlu0 %1553
        %1557 = vset.pattern.permute.xlu0 0
        %1558 = vperm.xlu0 %1557, %v1290
        %v1559 = vpop.permute.xlu0 %1558
        %1562 = vset.pattern.permute.xlu0 0
        %1563 = vperm.xlu0 %1562, %v1291
        %v1564 = vpop.permute.xlu0 %1563
        %1567 = vset.pattern.permute.xlu0 0
        %1568 = vperm.xlu0 %1567, %v1292
        %v1569 = vpop.permute.xlu0 %1568
        %1572 = vset.pattern.permute.xlu0 0
        %1573 = vperm.xlu0 %1572, %v1293
        %v1574 = vpop.permute.xlu0 %1573
        %1577 = vset.pattern.permute.xlu0 0
        %1578 = vperm.xlu0 %1577, %v1294
        %v1579 = vpop.permute.xlu0 %1578
        %1582 = vset.pattern.permute.xlu0 0
        %1583 = vperm.xlu0 %1582, %v1295
        %v1584 = vpop.permute.xlu0 %1583
        %1587 = vset.pattern.permute.xlu0 0
        %1588 = vperm.xlu0 %1587, %v1296
        %v1589 = vpop.permute.xlu0 %1588
        %v1591 = vadd.f32 %v1495, %v1514
        %v1592 = vadd.f32 %v1496, %v1519
        %v1593 = vadd.f32 %v1497, %v1524
        %v1594 = vadd.f32 %v1498, %v1529
        %v1595 = vadd.f32 %v1499, %v1534
        %v1596 = vadd.f32 %v1500, %v1539
        %v1597 = vadd.f32 %v1501, %v1544
        %v1598 = vadd.f32 %v1502, %v1549
        %v1599 = vadd.f32 %v1503, %v1554
        %v1600 = vadd.f32 %v1504, %v1559
        %v1601 = vadd.f32 %v1505, %v1564
        %v1602 = vadd.f32 %v1506, %v1569
        %v1603 = vadd.f32 %v1507, %v1574
        %v1604 = vadd.f32 %v1508, %v1579
        %v1605 = vadd.f32 %v1509, %v1584
        %v1606 = vadd.f32 %v1510, %v1589
        %v1607 = vmax.f32 %v1591, 0.0
        %v1608 = vmax.f32 %v1592, 0.0
        %v1609 = vmax.f32 %v1593, 0.0
        %v1610 = vmax.f32 %v1594, 0.0
        %v1611 = vmax.f32 %v1595, 0.0
        %v1612 = vmax.f32 %v1596, 0.0
        %v1613 = vmax.f32 %v1597, 0.0
        %v1614 = vmax.f32 %v1598, 0.0
        %v1615 = vmax.f32 %v1599, 0.0
        %v1616 = vmax.f32 %v1600, 0.0
        %v1617 = vmax.f32 %v1601, 0.0
        %v1618 = vmax.f32 %v1602, 0.0
        %v1619 = vmax.f32 %v1603, 0.0
        %v1620 = vmax.f32 %v1604, 0.0
        %v1621 = vmax.f32 %v1605, 0.0
        %v1622 = vmax.f32 %v1606, 0.0
        %vm1623 = vcmask 343040
        %1624 = vst.msk [vmem:[%s222] sm:$0xff] %vm1623, %v1607
        %1625 = vst.msk [vmem:[%s222 + $0x8] sm:$0xff] %vm1623, %v1608
        %1626 = vst.msk [vmem:[%s222 + $0x10] sm:$0xff] %vm1623, %v1609
        %1627 = vst.msk [vmem:[%s222 + $0x18] sm:$0xff] %vm1623, %v1610
        %1628 = vst.msk [vmem:[%s222 + $0x20] sm:$0xff] %vm1623, %v1611
        %1629 = vst.msk [vmem:[%s222 + $0x28] sm:$0xff] %vm1623, %v1612
        %1630 = vst.msk [vmem:[%s222 + $0x30] sm:$0xff] %vm1623, %v1613
        %1631 = vst.msk [vmem:[%s222 + $0x38] sm:$0xff] %vm1623, %v1614
        %1632 = vst.msk [vmem:[%s222 + $0x40] sm:$0xff] %vm1623, %v1615
        %1633 = vst.msk [vmem:[%s222 + $0x48] sm:$0xff] %vm1623, %v1616
        %1634 = vst.msk [vmem:[%s222 + $0x50] sm:$0xff] %vm1623, %v1617
        %1635 = vst.msk [vmem:[%s222 + $0x58] sm:$0xff] %vm1623, %v1618
        %1636 = vst.msk [vmem:[%s222 + $0x60] sm:$0xff] %vm1623, %v1619
        %1637 = vst.msk [vmem:[%s222 + $0x68] sm:$0xff] %vm1623, %v1620
        %1638 = vst.msk [vmem:[%s222 + $0x70] sm:$0xff] %vm1623, %v1621
        %1639 = vst.msk [vmem:[%s222 + $0x78] sm:$0xff] %vm1623, %v1622
        %s1640 = scalar_lea.vmem %s214, 32
        %v1641 = vld [vmem:[%s1640] sm:$0xff]
        %v1642 = vld [vmem:[%s1640 + $0x8] sm:$0xff]
        %v1643 = vld [vmem:[%s1640 + $0x10] sm:$0xff]
        %v1644 = vld [vmem:[%s1640 + $0x18] sm:$0xff]
        %1645 = vmatpush.msra.mxu0 0.0
        %1646 = vmatpush.msra.mxu0 0.0
        %1647 = vmatpush.msra.mxu0 0.0
        %1648 = vmatpush.msra.mxu0 0.0
        %1649 = vmatpush.msra.mxu0 0.0
        %1650 = vmatpush.msra.mxu0 0.0
        %1651 = vmatpush.msra.mxu0 0.0
        %1652 = vmatpush.msra.mxu0 0.0
        %1653 = vmatpush.msra.mxu0 0.0
        %1654 = vmatpush.msra.mxu0 0.0
        %1655 = vmatpush.msra.mxu0 0.0
        %1656 = vmatpush.msra.mxu0 0.0
        %1657 = vmatpush.msra.mxu0 %v1644
        %1658 = vmatpush.msra.mxu0 %v1643
        %1659 = vmatpush.msra.mxu0 %v1642
        %1660 = vmatpush.msra.mxu0 %v1641
        %1661 = vmatmul.f32.gmra.mxu0 %v1303
        %v1662 = vpop.f32.mrf.mxu0
        %v1663 = vadd.f32 0.0, %v1662
        %1664 = vmatmul.f32.gmra.mxu0 %v1306
        %v1665 = vpop.f32.mrf.mxu0
        %v1666 = vadd.f32 0.0, %v1665
        %1667 = vmatmul.f32.gmra.mxu0 %v1309
        %v1668 = vpop.f32.mrf.mxu0
        %v1669 = vadd.f32 0.0, %v1668
        %1670 = vmatmul.f32.gmra.mxu0 %v1312
        %v1671 = vpop.f32.mrf.mxu0
        %v1672 = vadd.f32 0.0, %v1671
        %1673 = vmatmul.f32.gmra.mxu0 %v1315
        %v1674 = vpop.f32.mrf.mxu0
        %v1675 = vadd.f32 0.0, %v1674
        %1676 = vmatmul.f32.gmra.mxu0 %v1318
        %v1677 = vpop.f32.mrf.mxu0
        %v1678 = vadd.f32 0.0, %v1677
        %1679 = vmatmul.f32.gmra.mxu0 %v1321
        %v1680 = vpop.f32.mrf.mxu0
        %v1681 = vadd.f32 0.0, %v1680
        %1682 = vmatmul.f32.gmra.mxu0 %v1324
        %v1683 = vpop.f32.mrf.mxu0
        %v1684 = vadd.f32 0.0, %v1683
        %1685 = vmatmul.f32.gmra.mxu0 %v1327
        %v1686 = vpop.f32.mrf.mxu0
        %v1687 = vadd.f32 0.0, %v1686
        %1688 = vmatmul.f32.gmra.mxu0 %v1330
        %v1689 = vpop.f32.mrf.mxu0
        %v1690 = vadd.f32 0.0, %v1689
        %1691 = vmatmul.f32.gmra.mxu0 %v1333
        %v1692 = vpop.f32.mrf.mxu0
        %v1693 = vadd.f32 0.0, %v1692
        %1694 = vmatmul.f32.gmra.mxu0 %v1336
        %v1695 = vpop.f32.mrf.mxu0
        %v1696 = vadd.f32 0.0, %v1695
        %1697 = vmatmul.f32.gmra.mxu0 %v1339
        %v1698 = vpop.f32.mrf.mxu0
        %v1699 = vadd.f32 0.0, %v1698
        %1700 = vmatmul.f32.gmra.mxu0 %v1342
        %v1701 = vpop.f32.mrf.mxu0
        %v1702 = vadd.f32 0.0, %v1701
        %1703 = vmatmul.f32.gmra.mxu0 %v1345
        %v1704 = vpop.f32.mrf.mxu0
        %v1705 = vadd.f32 0.0, %v1704
        %1706 = vmatmul.f32.gmra.mxu0 %v1348
        %v1707 = vpop.f32.mrf.mxu0
        %v1708 = vadd.f32 0.0, %v1707
        %1709 = vdwg.mxu0
        %v1710 = vmul.f32 %v1663, %v1418
        %v1711 = vmul.f32 %v1666, %v1423
        %v1712 = vmul.f32 %v1669, %v1428
        %v1713 = vmul.f32 %v1672, %v1433
        %v1714 = vmul.f32 %v1675, %v1438
        %v1715 = vmul.f32 %v1678, %v1443
        %v1716 = vmul.f32 %v1681, %v1448
        %v1717 = vmul.f32 %v1684, %v1453
        %v1718 = vmul.f32 %v1687, %v1458
        %v1719 = vmul.f32 %v1690, %v1463
        %v1720 = vmul.f32 %v1693, %v1468
        %v1721 = vmul.f32 %v1696, %v1473
        %v1722 = vmul.f32 %v1699, %v1478
        %v1723 = vmul.f32 %v1702, %v1483
        %v1724 = vmul.f32 %v1705, %v1488
        %v1725 = vmul.f32 %v1708, %v1493
        %v1726 = vadd.f32 %v1710, %v1514
        %v1727 = vadd.f32 %v1711, %v1519
        %v1728 = vadd.f32 %v1712, %v1524
        %v1729 = vadd.f32 %v1713, %v1529
        %v1730 = vadd.f32 %v1714, %v1534
        %v1731 = vadd.f32 %v1715, %v1539
        %v1732 = vadd.f32 %v1716, %v1544
        %v1733 = vadd.f32 %v1717, %v1549
        %v1734 = vadd.f32 %v1718, %v1554
        %v1735 = vadd.f32 %v1719, %v1559
        %v1736 = vadd.f32 %v1720, %v1564
        %v1737 = vadd.f32 %v1721, %v1569
        %v1738 = vadd.f32 %v1722, %v1574
        %v1739 = vadd.f32 %v1723, %v1579
        %v1740 = vadd.f32 %v1724, %v1584
        %v1741 = vadd.f32 %v1725, %v1589
        %v1742 = vmax.f32 %v1726, 0.0
        %v1743 = vmax.f32 %v1727, 0.0
        %v1744 = vmax.f32 %v1728, 0.0
        %v1745 = vmax.f32 %v1729, 0.0
        %v1746 = vmax.f32 %v1730, 0.0
        %v1747 = vmax.f32 %v1731, 0.0
        %v1748 = vmax.f32 %v1732, 0.0
        %v1749 = vmax.f32 %v1733, 0.0
        %v1750 = vmax.f32 %v1734, 0.0
        %v1751 = vmax.f32 %v1735, 0.0
        %v1752 = vmax.f32 %v1736, 0.0
        %v1753 = vmax.f32 %v1737, 0.0
        %v1754 = vmax.f32 %v1738, 0.0
        %v1755 = vmax.f32 %v1739, 0.0
        %v1756 = vmax.f32 %v1740, 0.0
        %v1757 = vmax.f32 %v1741, 0.0
        %s1758 = scalar_lea.vmem %s222, 128
        %1759 = vst.msk [vmem:[%s1758] sm:$0xff] %vm1623, %v1742
        %1760 = vst.msk [vmem:[%s1758 + $0x8] sm:$0xff] %vm1623, %v1743
        %1761 = vst.msk [vmem:[%s1758 + $0x10] sm:$0xff] %vm1623, %v1744
        %1762 = vst.msk [vmem:[%s1758 + $0x18] sm:$0xff] %vm1623, %v1745
        %1763 = vst.msk [vmem:[%s1758 + $0x20] sm:$0xff] %vm1623, %v1746
        %1764 = vst.msk [vmem:[%s1758 + $0x28] sm:$0xff] %vm1623, %v1747
        %1765 = vst.msk [vmem:[%s1758 + $0x30] sm:$0xff] %vm1623, %v1748
        %1766 = vst.msk [vmem:[%s1758 + $0x38] sm:$0xff] %vm1623, %v1749
        %1767 = vst.msk [vmem:[%s1758 + $0x40] sm:$0xff] %vm1623, %v1750
        %1768 = vst.msk [vmem:[%s1758 + $0x48] sm:$0xff] %vm1623, %v1751
        %1769 = vst.msk [vmem:[%s1758 + $0x50] sm:$0xff] %vm1623, %v1752
        %1770 = vst.msk [vmem:[%s1758 + $0x58] sm:$0xff] %vm1623, %v1753
        %1771 = vst.msk [vmem:[%s1758 + $0x60] sm:$0xff] %vm1623, %v1754
        %1772 = vst.msk [vmem:[%s1758 + $0x68] sm:$0xff] %vm1623, %v1755
        %1773 = vst.msk [vmem:[%s1758 + $0x70] sm:$0xff] %vm1623, %v1756
        %1774 = vst.msk [vmem:[%s1758 + $0x78] sm:$0xff] %vm1623, %v1757
      $region52: #{tpu_custom_call.1} parent=35 // pred_fallthru
        _
      %s1775 = smul.u32 %s21, %s22
      %s1776 = smul.u32 2, %s1775
      %p1777 = scmp.lt.s32.totalorder %s1776, 1
      %s1778 = scalar_select %p1777, %s1776, 1
      %s1779 = smul.addr %s1778, 16
      %s1780 = smul.addr %s1779, 8
      %s1781 = scalar_lea.vmem %s5, %s1780
      // Predicated region
      $region53: #{tpu_custom_call.1} parent=35 // pred_check
        %p1782 = pneg %p138
      $region54: #{tpu_custom_call.1} parent=35 // pred_check_branch
        %1784 = sbr.rel (%p1782) target = $region56
      $region55: #{tpu_custom_call.1} parent=35 // pred_region
        %s1785 = smul.u32 %s21, %s22
        %s1786 = smul.u32 2, %s1785
      $region56: #{tpu_custom_call.1} parent=35 // pred_fallthru
        _
    $region36: #{tpu_custom_call.1} parent=5 // pred_fallthru
      _
    %p1787 = scmp.le.s32.totalorder 2, %s12
    // Predicated region
    $region57: #{tpu_custom_call.1} parent=5 // pred_check
      %p1788 = pneg %p1787
    $region58: #{tpu_custom_call.1} parent=5 // pred_check_branch
      %1790 = sbr.rel (%p1788) target = $region60
    $region59: #{tpu_custom_call.1} parent=5 // pred_region
      %s1791 = ssub.s32 %s12, 2
      // Predicated region
      $region61: #{tpu_custom_call.1} parent=59 // pred_check
        %p1792 = pneg %p144
      $region62: #{tpu_custom_call.1} parent=59 // pred_check_branch
        %1794 = sbr.rel (%p1792) target = $region64
      $region63: #{tpu_custom_call.1} parent=59 // pred_region
        %s1795 = smul.u32 %s23, %s24
        %s1796 = smul.u32 2, %s1795
        %p1797 = scmp.lt.s32.totalorder %s1796, 1
        %s1798 = scalar_select %p1797, %s1796, 1
        %s1799 = smul.addr %s1798, 16
        %s1800 = smul.addr %s1799, 8
        %s1801 = scalar_lea.vmem %s5, %s1800
      $region64: #{tpu_custom_call.1} parent=59 // pred_fallthru
        _
    $region60: #{tpu_custom_call.1} parent=5 // pred_fallthru
      _
  $region6: #{tpu_custom_call.1} parent=0 // loop_footer
    %s16 = sadd.s32 1, %s12
  $region7: #{tpu_custom_call.1} parent=0 // loop_footer_branch
    %11 = sbr.rel target = $region3
  $region8: #{tpu_custom_call.1} parent=0 // loop_exit
    _

</llo_original>
